<compile_context>
chip_gen: v7x
topology: tpu7x:2x2x1
jax: 0.10.0
libtpu: 0.0.40
codegen_flags: <defaults>
</compile_context>

<pallas_src>
import functools

import jax
import jax.numpy as jnp
from jax.experimental import pallas as pl
from jax.experimental.pallas import tpu as pltpu

# ----------------------------- model config (small) -----------------------------
DIM = 32           # args.dim_
N_HEADS = 4        # args.n_heads_
N_KV_HEADS = 2     # args.n_kv_heads_
HEAD_DIM = DIM // N_HEADS
N_REP = N_HEADS // N_KV_HEADS
HIDDEN = 64        # MLP intermediate size
NORM_EPS = 1e-5
BATCH = 2
SEQ = 8

Q_DIM = N_HEADS * HEAD_DIM        # 32
KV_DIM = N_KV_HEADS * HEAD_DIM    # 16


# ----------------------------- in-kernel helpers ---------------------------------
def _rmsnorm(x, w, eps):
    ms = jnp.mean(x * x, axis=-1, keepdims=True)
    return x * jax.lax.rsqrt(ms + eps) * w


def _rotate_half(x):
    half = x.shape[-1] // 2
    return jnp.concatenate([-x[:, half:], x[:, :half]], axis=-1)


# ----------------------------- fused decoder-layer kernel ------------------------
def _decoder_layer_kernel(x_ref, mask_ref, cos_ref, sin_ref,
                          anw_ref, fnw_ref,
                          wqkv_ref, wo_ref, w13_ref, w2_ref,
                          o_ref, *, eps):
    # One grid point == one batch element: x is (SEQ, DIM).
    x = x_ref[...].astype(jnp.float32)                    # (S, D)
    cos = cos_ref[...].astype(jnp.float32)                # (S, hd)
    sin = sin_ref[...].astype(jnp.float32)                # (S, hd)
    bias = mask_ref[0].astype(jnp.float32)                # (S, S) additive causal bias

    # ---- attention block ----
    h = _rmsnorm(x, anw_ref[...].astype(jnp.float32), eps)
    qkv = jnp.dot(h, wqkv_ref[...], preferred_element_type=jnp.float32)  # (S, Q+2KV)
    q = qkv[:, :Q_DIM]
    k = qkv[:, Q_DIM:Q_DIM + KV_DIM]
    v = qkv[:, Q_DIM + KV_DIM:]

    # RoPE on K per kv-head, computed once and shared by N_REP query heads (GQA
    # repeat_kv without materializing the repeated tensor).
    k_heads, v_heads = [], []
    for kh in range(N_KV_HEADS):
        kk = k[:, kh * HEAD_DIM:(kh + 1) * HEAD_DIM]
        k_heads.append(kk * cos + _rotate_half(kk) * sin)
        v_heads.append(v[:, kh * HEAD_DIM:(kh + 1) * HEAD_DIM])

    scale = 1.0 / (HEAD_DIM ** 0.5)
    head_outs = []
    for hq in range(N_HEADS):
        qh = q[:, hq * HEAD_DIM:(hq + 1) * HEAD_DIM]
        qh = qh * cos + _rotate_half(qh) * sin
        k_h = k_heads[hq // N_REP]
        v_h = v_heads[hq // N_REP]
        s = jnp.dot(qh, k_h.T, preferred_element_type=jnp.float32) * scale + bias
        s = s - jnp.max(s, axis=-1, keepdims=True)
        p = jnp.exp(s)
        p = p * pl.reciprocal(jnp.sum(p, axis=-1, keepdims=True), approx=True)
        head_outs.append(jnp.dot(p, v_h, preferred_element_type=jnp.float32))
    attn = jnp.concatenate(head_outs, axis=-1)             # (S, D), heads re-packed

    x = x + jnp.dot(attn, wo_ref[...], preferred_element_type=jnp.float32)

    # ---- feed-forward block (SwiGLU, fused w1||w3 up-projection) ----
    hn = _rmsnorm(x, fnw_ref[...].astype(jnp.float32), eps)
    h13 = jnp.dot(hn, w13_ref[...], preferred_element_type=jnp.float32)  # (S, 2*HIDDEN)
    h1 = h13[:, :HIDDEN]
    h3 = h13[:, HIDDEN:]
    g = (h1 * jax.nn.sigmoid(h1)) * h3                     # F.silu(w1) * w3
    x = x + jnp.dot(g, w2_ref[...], preferred_element_type=jnp.float32)

    o_ref[...] = x.astype(o_ref.dtype)


def transformer_forward(data, mask, rope_angle, prepared):
    """data: (B, S, D); mask: (B, S, S) additive bias; rope_angle: (cos, sin) each (S, hd)."""
    B, S, D = data.shape
    cos, sin = rope_angle
    x2d = data.reshape(B * S, D)

    full2d = lambda b: (0, 0)
    row_blk = lambda b: (b, 0)

    out2d = pl.pallas_call(
        functools.partial(_decoder_layer_kernel, eps=NORM_EPS),
        out_shape=jax.ShapeDtypeStruct((B * S, D), data.dtype),
        grid=(B,),
        in_specs=[
            pl.BlockSpec((S, D), row_blk),                      # x rows of this batch
            pl.BlockSpec((1, S, S), lambda b: (b, 0, 0)),       # additive mask bias
            pl.BlockSpec((S, HEAD_DIM), full2d),                # rope cos
            pl.BlockSpec((S, HEAD_DIM), full2d),                # rope sin
            pl.BlockSpec((1, D), full2d),                       # attention_norm weight
            pl.BlockSpec((1, D), full2d),                       # ffn_norm weight
            pl.BlockSpec((D, Q_DIM + 2 * KV_DIM), full2d),      # [wq;wk;wv]^T
            pl.BlockSpec((D, D), full2d),                       # wo^T
            pl.BlockSpec((D, 2 * HIDDEN), full2d),              # [w1;w3]^T
            pl.BlockSpec((HIDDEN, D), full2d),                  # w2^T
        ],
        out_specs=pl.BlockSpec((S, D), row_blk),
        compiler_params=pltpu.CompilerParams(dimension_semantics=("parallel",)),
    )(x2d, mask, cos, sin,
      prepared["attention_norm"], prepared["ffn_norm"],
      prepared["wqkv_t"], prepared["wo_t"], prepared["w13_t"], prepared["w2_t"])

    return out2d.reshape(B, S, D)


# ----------------------------- deterministic setup -------------------------------
def make_params(key):
    keys = jax.random.split(key, 7)
    scale = 0.02
    return {
        "wq": scale * jax.random.normal(keys[0], (N_HEADS * HEAD_DIM, DIM), jnp.float32),
        "wk": scale * jax.random.normal(keys[1], (N_KV_HEADS * HEAD_DIM, DIM), jnp.float32),
        "wv": scale * jax.random.normal(keys[2], (N_KV_HEADS * HEAD_DIM, DIM), jnp.float32),
        "wo": scale * jax.random.normal(keys[3], (DIM, N_HEADS * HEAD_DIM), jnp.float32),
        "w1": scale * jax.random.normal(keys[4], (HIDDEN, DIM), jnp.float32),
        "w2": scale * jax.random.normal(keys[5], (DIM, HIDDEN), jnp.float32),
        "w3": scale * jax.random.normal(keys[6], (HIDDEN, DIM), jnp.float32),
        "attention_norm": jnp.ones((DIM,), jnp.float32),
        "ffn_norm": jnp.ones((DIM,), jnp.float32),
    }


def prepare_params(params):
    """One-time weight repack: PyTorch (out, in) Linear weights -> pre-transposed,
    pre-concatenated kernel operands. Done once at setup so the forward pass does
    no per-call transposes/concatenations."""
    wqkv = jnp.concatenate([params["wq"], params["wk"], params["wv"]], axis=0)  # (Q+2KV, D)
    w13 = jnp.concatenate([params["w1"], params["w3"]], axis=0)                 # (2H, D)
    return {
        "wqkv_t": jnp.asarray(wqkv.T),               # (D, Q+2KV)
        "wo_t": jnp.asarray(params["wo"].T),         # (D, D)
        "w13_t": jnp.asarray(w13.T),                 # (D, 2H)
        "w2_t": jnp.asarray(params["w2"].T),         # (H, D)
        "attention_norm": params["attention_norm"].reshape(1, DIM),
        "ffn_norm": params["ffn_norm"].reshape(1, DIM),
    }


def make_rope_angle(seq_len, head_dim, theta=10000.0):
    inv_freq = 1.0 / (theta ** (jnp.arange(0, head_dim, 2, dtype=jnp.float32) / head_dim))
    t = jnp.arange(seq_len, dtype=jnp.float32)
    freqs = jnp.outer(t, inv_freq)                   # (S, head_dim/2)
    emb = jnp.concatenate([freqs, freqs], axis=-1)
    return jnp.cos(emb), jnp.sin(emb)                # each (S, head_dim)


def make_causal_mask(batch, seq_len):
    """Additive causal bias shared across heads: (B, S, S)."""
    causal = jnp.tril(jnp.ones((seq_len, seq_len), dtype=bool))
    bias = jnp.where(causal, 0.0, -1e9).astype(jnp.float32)
    return jnp.broadcast_to(bias, (batch, seq_len, seq_len))


if __name__ == "__main__":
    key = jax.random.PRNGKey(0)
    k_data, k_params = jax.random.split(key)

    data = jax.random.normal(k_data, (BATCH, SEQ, DIM), jnp.float32)
    mask = make_causal_mask(BATCH, SEQ)
    rope_angle = make_rope_angle(SEQ, HEAD_DIM)
    params = prepare_params(make_params(k_params))

    out = transformer_forward(data, mask, rope_angle, params)
    out = jax.block_until_ready(out)
    assert out.shape == (BATCH, SEQ, DIM)
    print("KERNEL_OK")
</pallas_src>

<mosaic_0001>
module attributes {stable_mosaic.version = 11 : i64} {
  func.func @_decoder_layer_kernel(%arg0: i32, %arg1: memref<8x32xf32, #tpu.memory_space<vmem>>, %arg2: memref<1x8x8xf32, #tpu.memory_space<vmem>>, %arg3: memref<8x8xf32, #tpu.memory_space<vmem>>, %arg4: memref<8x8xf32, #tpu.memory_space<vmem>>, %arg5: memref<1x32xf32, #tpu.memory_space<vmem>>, %arg6: memref<1x32xf32, #tpu.memory_space<vmem>>, %arg7: memref<32x64xf32, #tpu.memory_space<vmem>>, %arg8: memref<32x32xf32, #tpu.memory_space<vmem>>, %arg9: memref<32x128xf32, #tpu.memory_space<vmem>>, %arg10: memref<64x32xf32, #tpu.memory_space<vmem>>, %arg11: memref<8x32xf32, #tpu.memory_space<vmem>>) attributes {dimension_semantics = [#tpu.dimension_semantics<parallel>], iteration_bounds = array<i64: 2>, scalar_prefetch = 0 : i64, scratch_operands = 0 : i64, tpu.core_type = #tpu.core_type<tc>, window_params = [{transform_indices = @transform_0, window_bounds = array<i64: 8, 32>}, {transform_indices = @transform_1, window_bounds = array<i64: 1, 8, 8>}, {pipeline_mode = #tpu.pipeline_mode<synchronous>, transform_indices = @transform_2, window_bounds = array<i64: 8, 8>}, {pipeline_mode = #tpu.pipeline_mode<synchronous>, transform_indices = @transform_3, window_bounds = array<i64: 8, 8>}, {pipeline_mode = #tpu.pipeline_mode<synchronous>, transform_indices = @transform_4, window_bounds = array<i64: 1, 32>}, {pipeline_mode = #tpu.pipeline_mode<synchronous>, transform_indices = @transform_5, window_bounds = array<i64: 1, 32>}, {pipeline_mode = #tpu.pipeline_mode<synchronous>, transform_indices = @transform_6, window_bounds = array<i64: 32, 64>}, {pipeline_mode = #tpu.pipeline_mode<synchronous>, transform_indices = @transform_7, window_bounds = array<i64: 32, 32>}, {pipeline_mode = #tpu.pipeline_mode<synchronous>, transform_indices = @transform_8, window_bounds = array<i64: 32, 128>}, {pipeline_mode = #tpu.pipeline_mode<synchronous>, transform_indices = @transform_9, window_bounds = array<i64: 64, 32>}, {transform_indices = @transform_10, window_bounds = array<i64: 8, 32>}]} {
    %c0 = arith.constant 0 : index
    %c0_0 = arith.constant 0 : index
    %0 = vector.load %arg1[%c0, %c0_0] : memref<8x32xf32, #tpu.memory_space<vmem>>, vector<8x32xf32>
    %c0_1 = arith.constant 0 : index
    %c0_2 = arith.constant 0 : index
    %1 = vector.load %arg3[%c0_1, %c0_2] : memref<8x8xf32, #tpu.memory_space<vmem>>, vector<8x8xf32>
    %c0_3 = arith.constant 0 : index
    %c0_4 = arith.constant 0 : index
    %2 = vector.load %arg4[%c0_3, %c0_4] : memref<8x8xf32, #tpu.memory_space<vmem>>, vector<8x8xf32>
    %c0_5 = arith.constant 0 : index
    %c0_6 = arith.constant 0 : index
    %c0_7 = arith.constant 0 : index
    %3 = vector.load %arg2[%c0_5, %c0_6, %c0_7] : memref<1x8x8xf32, #tpu.memory_space<vmem>>, vector<1x8x8xf32>
    %4 = vector.shape_cast %3 : vector<1x8x8xf32> to vector<8x8xf32>
    %c0_8 = arith.constant 0 : index
    %c0_9 = arith.constant 0 : index
    %5 = vector.load %arg5[%c0_8, %c0_9] : memref<1x32xf32, #tpu.memory_space<vmem>>, vector<1x32xf32>
    %6 = arith.mulf %0, %0 : vector<8x32xf32>
    %cst = arith.constant dense<0.000000e+00> : vector<8xf32>
    %7 = vector.multi_reduction <add>, %6, %cst [1] : vector<8x32xf32> to vector<8xf32>
    %8 = vector.shape_cast %7 : vector<8xf32> to vector<8x1xf32>
    %cst_10 = arith.constant 3.200000e+01 : f32
    %9 = vector.broadcast %cst_10 : f32 to vector<8x1xf32>
    %10 = arith.divf %8, %9 : vector<8x1xf32>
    %cst_11 = arith.constant 9.99999974E-6 : f32
    %11 = vector.broadcast %cst_11 : f32 to vector<8x1xf32>
    %12 = arith.addf %10, %11 : vector<8x1xf32>
    %13 = math.rsqrt %12 : vector<8x1xf32>
    %14 = vector.broadcast %13 : vector<8x1xf32> to vector<8x32xf32>
    %15 = arith.mulf %0, %14 : vector<8x32xf32>
    %16 = vector.broadcast %5 : vector<1x32xf32> to vector<8x32xf32>
    %17 = arith.mulf %15, %16 : vector<8x32xf32>
    %c0_12 = arith.constant 0 : index
    %c0_13 = arith.constant 0 : index
    %18 = vector.load %arg7[%c0_12, %c0_13] : memref<32x64xf32, #tpu.memory_space<vmem>>, vector<32x64xf32>
    %cst_14 = arith.constant dense<0.000000e+00> : vector<8x64xf32>
    %19 = tpu.matmul %17, %18, %cst_14 {dimension_numbers = #tpu.dot_dimension_numbers<[1], [0], [0], [1], [0, 0, 1, 1], [], []>} : vector<8x32xf32>, vector<32x64xf32>, vector<8x64xf32> -> vector<8x64xf32>
    %20 = vector.extract_strided_slice %19 {offsets = [0, 0], sizes = [8, 32], strides = [1, 1]} : vector<8x64xf32> to vector<8x32xf32>
    %21 = vector.extract_strided_slice %19 {offsets = [0, 32], sizes = [8, 16], strides = [1, 1]} : vector<8x64xf32> to vector<8x16xf32>
    %22 = vector.extract_strided_slice %19 {offsets = [0, 48], sizes = [8, 16], strides = [1, 1]} : vector<8x64xf32> to vector<8x16xf32>
    %23 = vector.extract_strided_slice %21 {offsets = [0, 0], sizes = [8, 8], strides = [1, 1]} : vector<8x16xf32> to vector<8x8xf32>
    %24 = arith.mulf %23, %1 : vector<8x8xf32>
    %25 = vector.extract_strided_slice %23 {offsets = [0, 4], sizes = [8, 4], strides = [1, 1]} : vector<8x8xf32> to vector<8x4xf32>
    %cst_15 = arith.constant 0.000000e+00 : f32
    %26 = vector.broadcast %cst_15 : f32 to vector<8x4xf32>
    %27 = arith.subf %26, %25 : vector<8x4xf32>
    %28 = vector.extract_strided_slice %23 {offsets = [0, 0], sizes = [8, 4], strides = [1, 1]} : vector<8x8xf32> to vector<8x4xf32>
    %29 = tpu.concatenate %27, %28 in 1 : vector<8x4xf32>, vector<8x4xf32> -> vector<8x8xf32>
    %30 = arith.mulf %29, %2 : vector<8x8xf32>
    %31 = arith.addf %24, %30 : vector<8x8xf32>
    %32 = vector.extract_strided_slice %22 {offsets = [0, 0], sizes = [8, 8], strides = [1, 1]} : vector<8x16xf32> to vector<8x8xf32>
    %33 = vector.extract_strided_slice %21 {offsets = [0, 8], sizes = [8, 8], strides = [1, 1]} : vector<8x16xf32> to vector<8x8xf32>
    %34 = arith.mulf %33, %1 : vector<8x8xf32>
    %35 = vector.extract_strided_slice %33 {offsets = [0, 4], sizes = [8, 4], strides = [1, 1]} : vector<8x8xf32> to vector<8x4xf32>
    %cst_16 = arith.constant 0.000000e+00 : f32
    %36 = vector.broadcast %cst_16 : f32 to vector<8x4xf32>
    %37 = arith.subf %36, %35 : vector<8x4xf32>
    %38 = vector.extract_strided_slice %33 {offsets = [0, 0], sizes = [8, 4], strides = [1, 1]} : vector<8x8xf32> to vector<8x4xf32>
    %39 = tpu.concatenate %37, %38 in 1 : vector<8x4xf32>, vector<8x4xf32> -> vector<8x8xf32>
    %40 = arith.mulf %39, %2 : vector<8x8xf32>
    %41 = arith.addf %34, %40 : vector<8x8xf32>
    %42 = vector.extract_strided_slice %22 {offsets = [0, 8], sizes = [8, 8], strides = [1, 1]} : vector<8x16xf32> to vector<8x8xf32>
    %43 = vector.extract_strided_slice %20 {offsets = [0, 0], sizes = [8, 8], strides = [1, 1]} : vector<8x32xf32> to vector<8x8xf32>
    %44 = arith.mulf %43, %1 : vector<8x8xf32>
    %45 = vector.extract_strided_slice %43 {offsets = [0, 4], sizes = [8, 4], strides = [1, 1]} : vector<8x8xf32> to vector<8x4xf32>
    %cst_17 = arith.constant 0.000000e+00 : f32
    %46 = vector.broadcast %cst_17 : f32 to vector<8x4xf32>
    %47 = arith.subf %46, %45 : vector<8x4xf32>
    %48 = vector.extract_strided_slice %43 {offsets = [0, 0], sizes = [8, 4], strides = [1, 1]} : vector<8x8xf32> to vector<8x4xf32>
    %49 = tpu.concatenate %47, %48 in 1 : vector<8x4xf32>, vector<8x4xf32> -> vector<8x8xf32>
    %50 = arith.mulf %49, %2 : vector<8x8xf32>
    %51 = arith.addf %44, %50 : vector<8x8xf32>
    %52 = tpu.transpose %31, [1, 0] : vector<8x8xf32> -> vector<8x8xf32>
    %cst_18 = arith.constant dense<0.000000e+00> : vector<8x8xf32>
    %53 = tpu.matmul %51, %52, %cst_18 {dimension_numbers = #tpu.dot_dimension_numbers<[1], [0], [0], [1], [0, 0, 1, 1], [], []>} : vector<8x8xf32>, vector<8x8xf32>, vector<8x8xf32> -> vector<8x8xf32>
    %cst_19 = arith.constant 0.353553385 : f32
    %54 = vector.broadcast %cst_19 : f32 to vector<8x8xf32>
    %55 = arith.mulf %53, %54 : vector<8x8xf32>
    %56 = arith.addf %55, %4 : vector<8x8xf32>
    %cst_20 = arith.constant dense<0xFF800000> : vector<8xf32>
    %57 = vector.multi_reduction <maximumf>, %56, %cst_20 [1] : vector<8x8xf32> to vector<8xf32>
    %58 = vector.shape_cast %57 : vector<8xf32> to vector<8x1xf32>
    %59 = vector.broadcast %58 : vector<8x1xf32> to vector<8x8xf32>
    %60 = arith.subf %56, %59 : vector<8x8xf32>
    %61 = math.exp %60 : vector<8x8xf32>
    %cst_21 = arith.constant dense<0.000000e+00> : vector<8xf32>
    %62 = vector.multi_reduction <add>, %61, %cst_21 [1] : vector<8x8xf32> to vector<8xf32>
    %63 = vector.shape_cast %62 : vector<8xf32> to vector<8x1xf32>
    %64 = tpu.reciprocal %63 {approx = true} : vector<8x1xf32> -> vector<8x1xf32>
    %65 = vector.broadcast %64 : vector<8x1xf32> to vector<8x8xf32>
    %66 = arith.mulf %61, %65 : vector<8x8xf32>
    %cst_22 = arith.constant dense<0.000000e+00> : vector<8x8xf32>
    %67 = tpu.matmul %66, %32, %cst_22 {dimension_numbers = #tpu.dot_dimension_numbers<[1], [0], [0], [1], [0, 0, 1, 1], [], []>} : vector<8x8xf32>, vector<8x8xf32>, vector<8x8xf32> -> vector<8x8xf32>
    %68 = vector.extract_strided_slice %20 {offsets = [0, 8], sizes = [8, 8], strides = [1, 1]} : vector<8x32xf32> to vector<8x8xf32>
    %69 = arith.mulf %68, %1 : vector<8x8xf32>
    %70 = vector.extract_strided_slice %68 {offsets = [0, 4], sizes = [8, 4], strides = [1, 1]} : vector<8x8xf32> to vector<8x4xf32>
    %cst_23 = arith.constant 0.000000e+00 : f32
    %71 = vector.broadcast %cst_23 : f32 to vector<8x4xf32>
    %72 = arith.subf %71, %70 : vector<8x4xf32>
    %73 = vector.extract_strided_slice %68 {offsets = [0, 0], sizes = [8, 4], strides = [1, 1]} : vector<8x8xf32> to vector<8x4xf32>
    %74 = tpu.concatenate %72, %73 in 1 : vector<8x4xf32>, vector<8x4xf32> -> vector<8x8xf32>
    %75 = arith.mulf %74, %2 : vector<8x8xf32>
    %76 = arith.addf %69, %75 : vector<8x8xf32>
    %77 = tpu.transpose %31, [1, 0] : vector<8x8xf32> -> vector<8x8xf32>
    %cst_24 = arith.constant dense<0.000000e+00> : vector<8x8xf32>
    %78 = tpu.matmul %76, %77, %cst_24 {dimension_numbers = #tpu.dot_dimension_numbers<[1], [0], [0], [1], [0, 0, 1, 1], [], []>} : vector<8x8xf32>, vector<8x8xf32>, vector<8x8xf32> -> vector<8x8xf32>
    %cst_25 = arith.constant 0.353553385 : f32
    %79 = vector.broadcast %cst_25 : f32 to vector<8x8xf32>
    %80 = arith.mulf %78, %79 : vector<8x8xf32>
    %81 = arith.addf %80, %4 : vector<8x8xf32>
    %cst_26 = arith.constant dense<0xFF800000> : vector<8xf32>
    %82 = vector.multi_reduction <maximumf>, %81, %cst_26 [1] : vector<8x8xf32> to vector<8xf32>
    %83 = vector.shape_cast %82 : vector<8xf32> to vector<8x1xf32>
    %84 = vector.broadcast %83 : vector<8x1xf32> to vector<8x8xf32>
    %85 = arith.subf %81, %84 : vector<8x8xf32>
    %86 = math.exp %85 : vector<8x8xf32>
    %cst_27 = arith.constant dense<0.000000e+00> : vector<8xf32>
    %87 = vector.multi_reduction <add>, %86, %cst_27 [1] : vector<8x8xf32> to vector<8xf32>
    %88 = vector.shape_cast %87 : vector<8xf32> to vector<8x1xf32>
    %89 = tpu.reciprocal %88 {approx = true} : vector<8x1xf32> -> vector<8x1xf32>
    %90 = vector.broadcast %89 : vector<8x1xf32> to vector<8x8xf32>
    %91 = arith.mulf %86, %90 : vector<8x8xf32>
    %cst_28 = arith.constant dense<0.000000e+00> : vector<8x8xf32>
    %92 = tpu.matmul %91, %32, %cst_28 {dimension_numbers = #tpu.dot_dimension_numbers<[1], [0], [0], [1], [0, 0, 1, 1], [], []>} : vector<8x8xf32>, vector<8x8xf32>, vector<8x8xf32> -> vector<8x8xf32>
    %93 = vector.extract_strided_slice %20 {offsets = [0, 16], sizes = [8, 8], strides = [1, 1]} : vector<8x32xf32> to vector<8x8xf32>
    %94 = arith.mulf %93, %1 : vector<8x8xf32>
    %95 = vector.extract_strided_slice %93 {offsets = [0, 4], sizes = [8, 4], strides = [1, 1]} : vector<8x8xf32> to vector<8x4xf32>
    %cst_29 = arith.constant 0.000000e+00 : f32
    %96 = vector.broadcast %cst_29 : f32 to vector<8x4xf32>
    %97 = arith.subf %96, %95 : vector<8x4xf32>
    %98 = vector.extract_strided_slice %93 {offsets = [0, 0], sizes = [8, 4], strides = [1, 1]} : vector<8x8xf32> to vector<8x4xf32>
    %99 = tpu.concatenate %97, %98 in 1 : vector<8x4xf32>, vector<8x4xf32> -> vector<8x8xf32>
    %100 = arith.mulf %99, %2 : vector<8x8xf32>
    %101 = arith.addf %94, %100 : vector<8x8xf32>
    %102 = tpu.transpose %41, [1, 0] : vector<8x8xf32> -> vector<8x8xf32>
    %cst_30 = arith.constant dense<0.000000e+00> : vector<8x8xf32>
    %103 = tpu.matmul %101, %102, %cst_30 {dimension_numbers = #tpu.dot_dimension_numbers<[1], [0], [0], [1], [0, 0, 1, 1], [], []>} : vector<8x8xf32>, vector<8x8xf32>, vector<8x8xf32> -> vector<8x8xf32>
    %cst_31 = arith.constant 0.353553385 : f32
    %104 = vector.broadcast %cst_31 : f32 to vector<8x8xf32>
    %105 = arith.mulf %103, %104 : vector<8x8xf32>
    %106 = arith.addf %105, %4 : vector<8x8xf32>
    %cst_32 = arith.constant dense<0xFF800000> : vector<8xf32>
    %107 = vector.multi_reduction <maximumf>, %106, %cst_32 [1] : vector<8x8xf32> to vector<8xf32>
    %108 = vector.shape_cast %107 : vector<8xf32> to vector<8x1xf32>
    %109 = vector.broadcast %108 : vector<8x1xf32> to vector<8x8xf32>
    %110 = arith.subf %106, %109 : vector<8x8xf32>
    %111 = math.exp %110 : vector<8x8xf32>
    %cst_33 = arith.constant dense<0.000000e+00> : vector<8xf32>
    %112 = vector.multi_reduction <add>, %111, %cst_33 [1] : vector<8x8xf32> to vector<8xf32>
    %113 = vector.shape_cast %112 : vector<8xf32> to vector<8x1xf32>
    %114 = tpu.reciprocal %113 {approx = true} : vector<8x1xf32> -> vector<8x1xf32>
    %115 = vector.broadcast %114 : vector<8x1xf32> to vector<8x8xf32>
    %116 = arith.mulf %111, %115 : vector<8x8xf32>
    %cst_34 = arith.constant dense<0.000000e+00> : vector<8x8xf32>
    %117 = tpu.matmul %116, %42, %cst_34 {dimension_numbers = #tpu.dot_dimension_numbers<[1], [0], [0], [1], [0, 0, 1, 1], [], []>} : vector<8x8xf32>, vector<8x8xf32>, vector<8x8xf32> -> vector<8x8xf32>
    %118 = vector.extract_strided_slice %20 {offsets = [0, 24], sizes = [8, 8], strides = [1, 1]} : vector<8x32xf32> to vector<8x8xf32>
    %119 = arith.mulf %118, %1 : vector<8x8xf32>
    %120 = vector.extract_strided_slice %118 {offsets = [0, 4], sizes = [8, 4], strides = [1, 1]} : vector<8x8xf32> to vector<8x4xf32>
    %cst_35 = arith.constant 0.000000e+00 : f32
    %121 = vector.broadcast %cst_35 : f32 to vector<8x4xf32>
    %122 = arith.subf %121, %120 : vector<8x4xf32>
    %123 = vector.extract_strided_slice %118 {offsets = [0, 0], sizes = [8, 4], strides = [1, 1]} : vector<8x8xf32> to vector<8x4xf32>
    %124 = tpu.concatenate %122, %123 in 1 : vector<8x4xf32>, vector<8x4xf32> -> vector<8x8xf32>
    %125 = arith.mulf %124, %2 : vector<8x8xf32>
    %126 = arith.addf %119, %125 : vector<8x8xf32>
    %127 = tpu.transpose %41, [1, 0] : vector<8x8xf32> -> vector<8x8xf32>
    %cst_36 = arith.constant dense<0.000000e+00> : vector<8x8xf32>
    %128 = tpu.matmul %126, %127, %cst_36 {dimension_numbers = #tpu.dot_dimension_numbers<[1], [0], [0], [1], [0, 0, 1, 1], [], []>} : vector<8x8xf32>, vector<8x8xf32>, vector<8x8xf32> -> vector<8x8xf32>
    %cst_37 = arith.constant 0.353553385 : f32
    %129 = vector.broadcast %cst_37 : f32 to vector<8x8xf32>
    %130 = arith.mulf %128, %129 : vector<8x8xf32>
    %131 = arith.addf %130, %4 : vector<8x8xf32>
    %cst_38 = arith.constant dense<0xFF800000> : vector<8xf32>
    %132 = vector.multi_reduction <maximumf>, %131, %cst_38 [1] : vector<8x8xf32> to vector<8xf32>
    %133 = vector.shape_cast %132 : vector<8xf32> to vector<8x1xf32>
    %134 = vector.broadcast %133 : vector<8x1xf32> to vector<8x8xf32>
    %135 = arith.subf %131, %134 : vector<8x8xf32>
    %136 = math.exp %135 : vector<8x8xf32>
    %cst_39 = arith.constant dense<0.000000e+00> : vector<8xf32>
    %137 = vector.multi_reduction <add>, %136, %cst_39 [1] : vector<8x8xf32> to vector<8xf32>
    %138 = vector.shape_cast %137 : vector<8xf32> to vector<8x1xf32>
    %139 = tpu.reciprocal %138 {approx = true} : vector<8x1xf32> -> vector<8x1xf32>
    %140 = vector.broadcast %139 : vector<8x1xf32> to vector<8x8xf32>
    %141 = arith.mulf %136, %140 : vector<8x8xf32>
    %cst_40 = arith.constant dense<0.000000e+00> : vector<8x8xf32>
    %142 = tpu.matmul %141, %42, %cst_40 {dimension_numbers = #tpu.dot_dimension_numbers<[1], [0], [0], [1], [0, 0, 1, 1], [], []>} : vector<8x8xf32>, vector<8x8xf32>, vector<8x8xf32> -> vector<8x8xf32>
    %143 = tpu.concatenate %67, %92, %117, %142 in 1 : vector<8x8xf32>, vector<8x8xf32>, vector<8x8xf32>, vector<8x8xf32> -> vector<8x32xf32>
    %c0_41 = arith.constant 0 : index
    %c0_42 = arith.constant 0 : index
    %144 = vector.load %arg8[%c0_41, %c0_42] : memref<32x32xf32, #tpu.memory_space<vmem>>, vector<32x32xf32>
    %cst_43 = arith.constant dense<0.000000e+00> : vector<8x32xf32>
    %145 = tpu.matmul %143, %144, %cst_43 {dimension_numbers = #tpu.dot_dimension_numbers<[1], [0], [0], [1], [0, 0, 1, 1], [], []>} : vector<8x32xf32>, vector<32x32xf32>, vector<8x32xf32> -> vector<8x32xf32>
    %146 = arith.addf %0, %145 : vector<8x32xf32>
    %c0_44 = arith.constant 0 : index
    %c0_45 = arith.constant 0 : index
    %147 = vector.load %arg6[%c0_44, %c0_45] : memref<1x32xf32, #tpu.memory_space<vmem>>, vector<1x32xf32>
    %148 = arith.mulf %146, %146 : vector<8x32xf32>
    %cst_46 = arith.constant dense<0.000000e+00> : vector<8xf32>
    %149 = vector.multi_reduction <add>, %148, %cst_46 [1] : vector<8x32xf32> to vector<8xf32>
    %150 = vector.shape_cast %149 : vector<8xf32> to vector<8x1xf32>
    %cst_47 = arith.constant 3.200000e+01 : f32
    %151 = vector.broadcast %cst_47 : f32 to vector<8x1xf32>
    %152 = arith.divf %150, %151 : vector<8x1xf32>
    %cst_48 = arith.constant 9.99999974E-6 : f32
    %153 = vector.broadcast %cst_48 : f32 to vector<8x1xf32>
    %154 = arith.addf %152, %153 : vector<8x1xf32>
    %155 = math.rsqrt %154 : vector<8x1xf32>
    %156 = vector.broadcast %155 : vector<8x1xf32> to vector<8x32xf32>
    %157 = arith.mulf %146, %156 : vector<8x32xf32>
    %158 = vector.broadcast %147 : vector<1x32xf32> to vector<8x32xf32>
    %159 = arith.mulf %157, %158 : vector<8x32xf32>
    %c0_49 = arith.constant 0 : index
    %c0_50 = arith.constant 0 : index
    %160 = vector.load %arg9[%c0_49, %c0_50] : memref<32x128xf32, #tpu.memory_space<vmem>>, vector<32x128xf32>
    %cst_51 = arith.constant dense<0.000000e+00> : vector<8x128xf32>
    %161 = tpu.matmul %159, %160, %cst_51 {dimension_numbers = #tpu.dot_dimension_numbers<[1], [0], [0], [1], [0, 0, 1, 1], [], []>} : vector<8x32xf32>, vector<32x128xf32>, vector<8x128xf32> -> vector<8x128xf32>
    %162 = vector.extract_strided_slice %161 {offsets = [0, 0], sizes = [8, 64], strides = [1, 1]} : vector<8x128xf32> to vector<8x64xf32>
    %163 = vector.extract_strided_slice %161 {offsets = [0, 64], sizes = [8, 64], strides = [1, 1]} : vector<8x128xf32> to vector<8x64xf32>
    %164 = arith.negf %162 : vector<8x64xf32>
    %165 = math.exp %164 : vector<8x64xf32>
    %cst_52 = arith.constant 1.000000e+00 : f32
    %166 = vector.broadcast %cst_52 : f32 to vector<8x64xf32>
    %167 = arith.addf %166, %165 : vector<8x64xf32>
    %168 = arith.divf %166, %167 : vector<8x64xf32>
    %169 = arith.mulf %162, %168 : vector<8x64xf32>
    %170 = arith.mulf %169, %163 : vector<8x64xf32>
    %c0_53 = arith.constant 0 : index
    %c0_54 = arith.constant 0 : index
    %171 = vector.load %arg10[%c0_53, %c0_54] : memref<64x32xf32, #tpu.memory_space<vmem>>, vector<64x32xf32>
    %cst_55 = arith.constant dense<0.000000e+00> : vector<8x32xf32>
    %172 = tpu.matmul %170, %171, %cst_55 {dimension_numbers = #tpu.dot_dimension_numbers<[1], [0], [0], [1], [0, 0, 1, 1], [], []>} : vector<8x64xf32>, vector<64x32xf32>, vector<8x32xf32> -> vector<8x32xf32>
    %173 = arith.addf %146, %172 : vector<8x32xf32>
    %c0_56 = arith.constant 0 : index
    %c0_57 = arith.constant 0 : index
    %174 = vector.load %arg11[%c0_56, %c0_57] : memref<8x32xf32, #tpu.memory_space<vmem>>, vector<8x32xf32>
    tpu.vector_store %arg11[%c0_56, %c0_57], %173 {strides = array<i32>} : memref<8x32xf32, #tpu.memory_space<vmem>>, vector<8x32xf32>,
    return
  }
  func.func @transform_0(%arg0: i32) -> (i32, i32) {
    %c0_i32 = arith.constant 0 : i32
    %c0_i32_0 = arith.constant 0 : i32
    return %arg0, %c0_i32 : i32, i32
  }
  func.func @transform_1(%arg0: i32) -> (i32, i32, i32) {
    %c0_i32 = arith.constant 0 : i32
    %c0_i32_0 = arith.constant 0 : i32
    %c0_i32_1 = arith.constant 0 : i32
    return %arg0, %c0_i32, %c0_i32_0 : i32, i32, i32
  }
  func.func @transform_2(%arg0: i32) -> (i32, i32) {
    %c0_i32 = arith.constant 0 : i32
    %c0_i32_0 = arith.constant 0 : i32
    %c0_i32_1 = arith.constant 0 : i32
    return %c0_i32, %c0_i32_0 : i32, i32
  }
  func.func @transform_3(%arg0: i32) -> (i32, i32) {
    %c0_i32 = arith.constant 0 : i32
    %c0_i32_0 = arith.constant 0 : i32
    %c0_i32_1 = arith.constant 0 : i32
    return %c0_i32, %c0_i32_0 : i32, i32
  }
  func.func @transform_4(%arg0: i32) -> (i32, i32) {
    %c0_i32 = arith.constant 0 : i32
    %c0_i32_0 = arith.constant 0 : i32
    %c0_i32_1 = arith.constant 0 : i32
    return %c0_i32, %c0_i32_0 : i32, i32
  }
  func.func @transform_5(%arg0: i32) -> (i32, i32) {
    %c0_i32 = arith.constant 0 : i32
    %c0_i32_0 = arith.constant 0 : i32
    %c0_i32_1 = arith.constant 0 : i32
    return %c0_i32, %c0_i32_0 : i32, i32
  }
  func.func @transform_6(%arg0: i32) -> (i32, i32) {
    %c0_i32 = arith.constant 0 : i32
    %c0_i32_0 = arith.constant 0 : i32
    %c0_i32_1 = arith.constant 0 : i32
    return %c0_i32, %c0_i32_0 : i32, i32
  }
  func.func @transform_7(%arg0: i32) -> (i32, i32) {
    %c0_i32 = arith.constant 0 : i32
    %c0_i32_0 = arith.constant 0 : i32
    %c0_i32_1 = arith.constant 0 : i32
    return %c0_i32, %c0_i32_0 : i32, i32
  }
  func.func @transform_8(%arg0: i32) -> (i32, i32) {
    %c0_i32 = arith.constant 0 : i32
    %c0_i32_0 = arith.constant 0 : i32
    %c0_i32_1 = arith.constant 0 : i32
    return %c0_i32, %c0_i32_0 : i32, i32
  }
  func.func @transform_9(%arg0: i32) -> (i32, i32) {
    %c0_i32 = arith.constant 0 : i32
    %c0_i32_0 = arith.constant 0 : i32
    %c0_i32_1 = arith.constant 0 : i32
    return %c0_i32, %c0_i32_0 : i32, i32
  }
  func.func @transform_10(%arg0: i32) -> (i32, i32) {
    %c0_i32 = arith.constant 0 : i32
    %c0_i32_0 = arith.constant 0 : i32
    return %arg0, %c0_i32 : i32, i32
  }
}

</mosaic_0001>

<llo_original>
// kernel: tpu_custom_call.1
$region0: #{tpu_custom_call.1}
  #allocation0 [shape = 'u32[]', space=smem, size = 0x4, offset = 0x4, fixed_abs, tag = 'smem constant byte address 0x4 - core index']
  #allocation1 [shape = 'u32[144,128]{1,0:T(1,128)}', space=vmem, size = 0x12000, scoped, tag = 'internal scratch']
  %s0 = inlined_call_operand.hbm [shape: f32[16,32], index: 0, kind: input, shape index: {}]
  %s1 = inlined_call_operand.hbm [shape: f32[2,8,8], index: 1, kind: input, shape index: {}]
  %s2 = inlined_call_operand.hbm [shape: f32[8,8], index: 2, kind: input, shape index: {}]
  %s3 = inlined_call_operand.hbm [shape: f32[8,8], index: 3, kind: input, shape index: {}]
  %s4 = inlined_call_operand.vmem [shape: f32[1,32], index: 4, kind: input, shape index: {}]
  %s5 = inlined_call_operand.vmem [shape: f32[1,32], index: 5, kind: input, shape index: {}]
  %s6 = inlined_call_operand.vmem [shape: f32[32,64], index: 6, kind: input, shape index: {}]
  %s7 = inlined_call_operand.vmem [shape: f32[32,32], index: 7, kind: input, shape index: {}]
  %s8 = inlined_call_operand.vmem [shape: f32[32,128], index: 8, kind: input, shape index: {}]
  %s9 = inlined_call_operand.vmem [shape: f32[64,32], index: 9, kind: input, shape index: {}]
  %s10 = inlined_call_operand.hbm [shape: f32[16,32], index: 10, kind: output, shape index: {}]
  %s11 = sld [smem:[#allocation0]]
  $region89: #{tpu_custom_call.1} parent=0
    _
  %s13 = ssub.s32 1, %s11
  %s14 = scalar_select 0, %s13, %s11
  $region1: #{tpu_custom_call.1} parent=0
    #allocation2 [shape = 'u8[8192]{0}', space=vmem, size = 0x2000, scoped, tag = 'input window, operand 0']
    #allocation3 [shape = 's32[2]{0}', space=sflag, size = 0x8, scoped, tag = 'scoped memory for tpu_custom_call.1']
    #allocation4 [shape = 's32[2]{0}', space=sflag, size = 0x8, scoped, tag = 'scoped memory for tpu_custom_call.1']
    #allocation5 [shape = 'u8[8192]{0}', space=vmem, size = 0x2000, scoped, tag = 'input window, operand 1']
    #allocation6 [shape = 's32[2]{0}', space=sflag, size = 0x8, scoped, tag = 'scoped memory for tpu_custom_call.1']
    #allocation7 [shape = 'u8[4096]{0}', space=vmem, size = 0x1000, scoped, tag = 'input window, operand 2, single buffered']
    #allocation8 [shape = 'u8[4096]{0}', space=vmem, size = 0x1000, scoped, tag = 'input window, operand 3, single buffered']
    #allocation9 [shape = 's32[1]{0}', space=sflag, size = 0x4, scoped, tag = 'scoped memory for tpu_custom_call.1']
    #allocation10 [shape = 'u8[8192]{0}', space=vmem, size = 0x2000, scoped, tag = 'output window, operand 0']
    %15 = vsyncpa [#allocation3], 0
    %s16 = scalar_lea.sflag [#allocation3], 1
    %17 = vsyncpa %s16, 0
    %18 = vsyncpa [#allocation6], 0
    %s19 = scalar_lea.sflag [#allocation6], 1
    %20 = vsyncpa %s19, 0
    %21 = vsyncpa [#allocation9], 0
    %22 = vsyncpa [#allocation4], 0
    %s23 = scalar_lea.sflag [#allocation4], 1
    %24 = vsyncpa %s23, 0
    loop: start=0, step=1, limit=4
    $region2: #{tpu_custom_call.1} parent=1 // loop_pre_header
      _
    $region3: #{tpu_custom_call.1} parent=1 // loop_header
      %s26 = sphi 0, %s30
      %p27 = scmp.ge.s32.totalorder %s26, 4
      %s36 = sphi 0, %s38
      %s39 = sphi 0, %s36
      %s40 = sphi 0, %s39
      %s56 = sphi 0, %s40
      %s62 = sphi 0, %s64
      %s65 = sphi 0, %s62
      %s66 = sphi 0, %s65
      %s82 = sphi 0, %s66
      %s86 = sphi 0, %s86
      %s88 = sphi 0, %s86
      %s89 = sphi 0, %s88
      %s103 = sphi 0, %s89
      %s107 = sphi 0, %s107
      %s109 = sphi 0, %s107
      %s110 = sphi 0, %s109
      %s124 = sphi 0, %s110
      %s128 = sphi 0, %s128
      %s130 = sphi 0, %s128
      %s131 = sphi 0, %s130
      %s145 = sphi 0, %s131
      %s149 = sphi 0, %s149
      %s151 = sphi 0, %s149
      %s152 = sphi 0, %s151
      %s166 = sphi 0, %s152
      %s170 = sphi 0, %s170
      %s172 = sphi 0, %s170
      %s173 = sphi 0, %s172
      %s187 = sphi 0, %s173
      %s191 = sphi 0, %s191
      %s193 = sphi 0, %s191
      %s194 = sphi 0, %s193
      %s208 = sphi 0, %s194
      %s212 = sphi 0, %s212
      %s214 = sphi 0, %s212
      %s215 = sphi 0, %s214
      %s229 = sphi 0, %s215
      %s233 = sphi 0, %s233
      %s235 = sphi 0, %s233
      %s236 = sphi 0, %s235
      %s250 = sphi 0, %s236
      %s256 = sphi 0, %s258
      %s259 = sphi 0, %s256
      %s260 = sphi 0, %s259
      %s276 = sphi 0, %s260
    $region4: #{tpu_custom_call.1} parent=1 // loop_header_branch
      %29 = sbr.rel (%p27) target = $region8
    $region5: #{tpu_custom_call.1} parent=1 // loop_body
      %s31 = ssub.s32 %s26, 1
      %s32 = ssub.s32 %s26, 2
      %s33 = sadd.s32 %s26, 1
      %s34 = ssub.s32 %s26, %s33
      %p35 = scmp.eq.s32.totalorder %s34, 0
      %s37 = sadd.s32 %s36, 1
      %s38 = scalar_select %p35, %s36, %s37
      %p41 = pneg %p35
      %p42 = scmp.eq.s32.totalorder %s26, 1
      %p43 = por %p41, %p42
      %p44 = scmp.ne.s32.totalorder %s36, %s39
      %p45 = scmp.eq.s32.totalorder %s26, 0
      %p46 = por %p44, %p45
      %p47 = scmp.ne.s32.totalorder %s36, %s39
      %p48 = scmp.eq.s32.totalorder %s31, 1
      %p49 = por %p47, %p48
      %p50 = scmp.ne.s32.totalorder %s39, %s40
      %p51 = scmp.eq.s32.totalorder %s31, 0
      %p52 = por %p50, %p51
      %p53 = scmp.ne.s32.totalorder %s39, %s40
      %p54 = scmp.eq.s32.totalorder %s32, 1
      %p55 = por %p53, %p54
      %p57 = scmp.ne.s32.totalorder %s40, %s56
      %p58 = scmp.eq.s32.totalorder %s32, 0
      %p59 = por %p57, %p58
      %s60 = ssub.s32 %s26, %s33
      %p61 = scmp.eq.s32.totalorder %s60, 0
      %s63 = sadd.s32 %s62, 1
      %s64 = scalar_select %p61, %s62, %s63
      %p67 = pneg %p61
      %p68 = scmp.eq.s32.totalorder %s26, 1
      %p69 = por %p67, %p68
      %p70 = scmp.ne.s32.totalorder %s62, %s65
      %p71 = scmp.eq.s32.totalorder %s26, 0
      %p72 = por %p70, %p71
      %p73 = scmp.ne.s32.totalorder %s62, %s65
      %p74 = scmp.eq.s32.totalorder %s31, 1
      %p75 = por %p73, %p74
      %p76 = scmp.ne.s32.totalorder %s65, %s66
      %p77 = scmp.eq.s32.totalorder %s31, 0
      %p78 = por %p76, %p77
      %p79 = scmp.ne.s32.totalorder %s65, %s66
      %p80 = scmp.eq.s32.totalorder %s32, 1
      %p81 = por %p79, %p80
      %p83 = scmp.ne.s32.totalorder %s66, %s82
      %p84 = scmp.eq.s32.totalorder %s32, 0
      %p85 = por %p83, %p84
      %s87 = sadd.s32 %s86, 1
      %p90 = scmp.eq.s32.totalorder %s26, 1
      %p91 = scmp.ne.s32.totalorder %s86, %s88
      %p92 = scmp.eq.s32.totalorder %s26, 0
      %p93 = por %p91, %p92
      %p94 = scmp.ne.s32.totalorder %s86, %s88
      %p95 = scmp.eq.s32.totalorder %s31, 1
      %p96 = por %p94, %p95
      %p97 = scmp.ne.s32.totalorder %s88, %s89
      %p98 = scmp.eq.s32.totalorder %s31, 0
      %p99 = por %p97, %p98
      %p100 = scmp.ne.s32.totalorder %s88, %s89
      %p101 = scmp.eq.s32.totalorder %s32, 1
      %p102 = por %p100, %p101
      %p104 = scmp.ne.s32.totalorder %s89, %s103
      %p105 = scmp.eq.s32.totalorder %s32, 0
      %p106 = por %p104, %p105
      %s108 = sadd.s32 %s107, 1
      %p111 = scmp.eq.s32.totalorder %s26, 1
      %p112 = scmp.ne.s32.totalorder %s107, %s109
      %p113 = scmp.eq.s32.totalorder %s26, 0
      %p114 = por %p112, %p113
      %p115 = scmp.ne.s32.totalorder %s107, %s109
      %p116 = scmp.eq.s32.totalorder %s31, 1
      %p117 = por %p115, %p116
      %p118 = scmp.ne.s32.totalorder %s109, %s110
      %p119 = scmp.eq.s32.totalorder %s31, 0
      %p120 = por %p118, %p119
      %p121 = scmp.ne.s32.totalorder %s109, %s110
      %p122 = scmp.eq.s32.totalorder %s32, 1
      %p123 = por %p121, %p122
      %p125 = scmp.ne.s32.totalorder %s110, %s124
      %p126 = scmp.eq.s32.totalorder %s32, 0
      %p127 = por %p125, %p126
      %s129 = sadd.s32 %s128, 1
      %p132 = scmp.eq.s32.totalorder %s26, 1
      %p133 = scmp.ne.s32.totalorder %s128, %s130
      %p134 = scmp.eq.s32.totalorder %s26, 0
      %p135 = por %p133, %p134
      %p136 = scmp.ne.s32.totalorder %s128, %s130
      %p137 = scmp.eq.s32.totalorder %s31, 1
      %p138 = por %p136, %p137
      %p139 = scmp.ne.s32.totalorder %s130, %s131
      %p140 = scmp.eq.s32.totalorder %s31, 0
      %p141 = por %p139, %p140
      %p142 = scmp.ne.s32.totalorder %s130, %s131
      %p143 = scmp.eq.s32.totalorder %s32, 1
      %p144 = por %p142, %p143
      %p146 = scmp.ne.s32.totalorder %s131, %s145
      %p147 = scmp.eq.s32.totalorder %s32, 0
      %p148 = por %p146, %p147
      %s150 = sadd.s32 %s149, 1
      %p153 = scmp.eq.s32.totalorder %s26, 1
      %p154 = scmp.ne.s32.totalorder %s149, %s151
      %p155 = scmp.eq.s32.totalorder %s26, 0
      %p156 = por %p154, %p155
      %p157 = scmp.ne.s32.totalorder %s149, %s151
      %p158 = scmp.eq.s32.totalorder %s31, 1
      %p159 = por %p157, %p158
      %p160 = scmp.ne.s32.totalorder %s151, %s152
      %p161 = scmp.eq.s32.totalorder %s31, 0
      %p162 = por %p160, %p161
      %p163 = scmp.ne.s32.totalorder %s151, %s152
      %p164 = scmp.eq.s32.totalorder %s32, 1
      %p165 = por %p163, %p164
      %p167 = scmp.ne.s32.totalorder %s152, %s166
      %p168 = scmp.eq.s32.totalorder %s32, 0
      %p169 = por %p167, %p168
      %s171 = sadd.s32 %s170, 1
      %p174 = scmp.eq.s32.totalorder %s26, 1
      %p175 = scmp.ne.s32.totalorder %s170, %s172
      %p176 = scmp.eq.s32.totalorder %s26, 0
      %p177 = por %p175, %p176
      %p178 = scmp.ne.s32.totalorder %s170, %s172
      %p179 = scmp.eq.s32.totalorder %s31, 1
      %p180 = por %p178, %p179
      %p181 = scmp.ne.s32.totalorder %s172, %s173
      %p182 = scmp.eq.s32.totalorder %s31, 0
      %p183 = por %p181, %p182
      %p184 = scmp.ne.s32.totalorder %s172, %s173
      %p185 = scmp.eq.s32.totalorder %s32, 1
      %p186 = por %p184, %p185
      %p188 = scmp.ne.s32.totalorder %s173, %s187
      %p189 = scmp.eq.s32.totalorder %s32, 0
      %p190 = por %p188, %p189
      %s192 = sadd.s32 %s191, 1
      %p195 = scmp.eq.s32.totalorder %s26, 1
      %p196 = scmp.ne.s32.totalorder %s191, %s193
      %p197 = scmp.eq.s32.totalorder %s26, 0
      %p198 = por %p196, %p197
      %p199 = scmp.ne.s32.totalorder %s191, %s193
      %p200 = scmp.eq.s32.totalorder %s31, 1
      %p201 = por %p199, %p200
      %p202 = scmp.ne.s32.totalorder %s193, %s194
      %p203 = scmp.eq.s32.totalorder %s31, 0
      %p204 = por %p202, %p203
      %p205 = scmp.ne.s32.totalorder %s193, %s194
      %p206 = scmp.eq.s32.totalorder %s32, 1
      %p207 = por %p205, %p206
      %p209 = scmp.ne.s32.totalorder %s194, %s208
      %p210 = scmp.eq.s32.totalorder %s32, 0
      %p211 = por %p209, %p210
      %s213 = sadd.s32 %s212, 1
      %p216 = scmp.eq.s32.totalorder %s26, 1
      %p217 = scmp.ne.s32.totalorder %s212, %s214
      %p218 = scmp.eq.s32.totalorder %s26, 0
      %p219 = por %p217, %p218
      %p220 = scmp.ne.s32.totalorder %s212, %s214
      %p221 = scmp.eq.s32.totalorder %s31, 1
      %p222 = por %p220, %p221
      %p223 = scmp.ne.s32.totalorder %s214, %s215
      %p224 = scmp.eq.s32.totalorder %s31, 0
      %p225 = por %p223, %p224
      %p226 = scmp.ne.s32.totalorder %s214, %s215
      %p227 = scmp.eq.s32.totalorder %s32, 1
      %p228 = por %p226, %p227
      %p230 = scmp.ne.s32.totalorder %s215, %s229
      %p231 = scmp.eq.s32.totalorder %s32, 0
      %p232 = por %p230, %p231
      %s234 = sadd.s32 %s233, 1
      %p237 = scmp.eq.s32.totalorder %s26, 1
      %p238 = scmp.ne.s32.totalorder %s233, %s235
      %p239 = scmp.eq.s32.totalorder %s26, 0
      %p240 = por %p238, %p239
      %p241 = scmp.ne.s32.totalorder %s233, %s235
      %p242 = scmp.eq.s32.totalorder %s31, 1
      %p243 = por %p241, %p242
      %p244 = scmp.ne.s32.totalorder %s235, %s236
      %p245 = scmp.eq.s32.totalorder %s31, 0
      %p246 = por %p244, %p245
      %p247 = scmp.ne.s32.totalorder %s235, %s236
      %p248 = scmp.eq.s32.totalorder %s32, 1
      %p249 = por %p247, %p248
      %p251 = scmp.ne.s32.totalorder %s236, %s250
      %p252 = scmp.eq.s32.totalorder %s32, 0
      %p253 = por %p251, %p252
      %s254 = ssub.s32 %s26, %s33
      %p255 = scmp.eq.s32.totalorder %s254, 0
      %s257 = sadd.s32 %s256, 1
      %s258 = scalar_select %p255, %s256, %s257
      %p261 = pneg %p255
      %p262 = scmp.eq.s32.totalorder %s26, 1
      %p263 = por %p261, %p262
      %p264 = scmp.ne.s32.totalorder %s256, %s259
      %p265 = scmp.eq.s32.totalorder %s26, 0
      %p266 = por %p264, %p265
      %p267 = scmp.ne.s32.totalorder %s256, %s259
      %p268 = scmp.eq.s32.totalorder %s31, 1
      %p269 = por %p267, %p268
      %p270 = scmp.ne.s32.totalorder %s259, %s260
      %p271 = scmp.eq.s32.totalorder %s31, 0
      %p272 = por %p270, %p271
      %p273 = scmp.ne.s32.totalorder %s259, %s260
      %p274 = scmp.eq.s32.totalorder %s32, 1
      %p275 = por %p273, %p274
      %p277 = scmp.ne.s32.totalorder %s260, %s276
      %p278 = scmp.eq.s32.totalorder %s32, 0
      %p279 = por %p277, %p278
      %p280 = scmp.le.s32.totalorder 1, %s26
      %p281 = scmp.lt.s32.totalorder %s26, 3
      %p282 = pnand %p280, %p281
      %p283 = pneg %p282
      // Predicated region
      $region9: #{tpu_custom_call.1} parent=5 // pred_check
        _
      $region10: #{tpu_custom_call.1} parent=5 // pred_check_branch
        %285 = sbr.rel (%p282) target = $region12
      $region11: #{tpu_custom_call.1} parent=5 // pred_region
        %s286 = ssub.s32 %s26, 1
        // Predicated region
        $region13: #{tpu_custom_call.1} parent=11 // pred_check
          %p287 = pneg %p99
        $region14: #{tpu_custom_call.1} parent=11 // pred_check_branch
          %289 = sbr.rel (%p287) target = $region16
        $region15: #{tpu_custom_call.1} parent=11 // pred_region
          %s291 = ssub.s32 128, 128
          %292 = vsyncadd [#allocation6], %s291
          %s294 = sshll.u32 [#allocation7], 4
          %s295 = int_to_ptr.vmem [resolvable:$true] %s294
          %297 = dma.hbm_to_vmem [thread:$0]  %s2, 128, %s295, [#allocation6]
        $region16: #{tpu_custom_call.1} parent=11 // pred_fallthru
          _
        // Predicated region
        $region17: #{tpu_custom_call.1} parent=11 // pred_check
          %p298 = pneg %p120
        $region18: #{tpu_custom_call.1} parent=11 // pred_check_branch
          %300 = sbr.rel (%p298) target = $region20
        $region19: #{tpu_custom_call.1} parent=11 // pred_region
          %s302 = ssub.s32 128, 128
          %303 = vsyncadd [#allocation9], %s302
          %s305 = sshll.u32 [#allocation8], 4
          %s306 = int_to_ptr.vmem [resolvable:$true] %s305
          %308 = dma.hbm_to_vmem [thread:$0]  %s3, 128, %s306, [#allocation9]
        $region20: #{tpu_custom_call.1} parent=11 // pred_fallthru
          _
        // Predicated region
        $region21: #{tpu_custom_call.1} parent=11 // pred_check
          %p309 = pneg %p141
        $region22: #{tpu_custom_call.1} parent=11 // pred_check_branch
          %311 = sbr.rel (%p309) target = $region24
        $region23: #{tpu_custom_call.1} parent=11 // pred_region
          _
        $region24: #{tpu_custom_call.1} parent=11 // pred_fallthru
          _
        // Predicated region
        $region25: #{tpu_custom_call.1} parent=11 // pred_check
          %p312 = pneg %p162
        $region26: #{tpu_custom_call.1} parent=11 // pred_check_branch
          %314 = sbr.rel (%p312) target = $region28
        $region27: #{tpu_custom_call.1} parent=11 // pred_region
          _
        $region28: #{tpu_custom_call.1} parent=11 // pred_fallthru
          _
        // Predicated region
        $region29: #{tpu_custom_call.1} parent=11 // pred_check
          %p315 = pneg %p183
        $region30: #{tpu_custom_call.1} parent=11 // pred_check_branch
          %317 = sbr.rel (%p315) target = $region32
        $region31: #{tpu_custom_call.1} parent=11 // pred_region
          _
        $region32: #{tpu_custom_call.1} parent=11 // pred_fallthru
          _
        // Predicated region
        $region33: #{tpu_custom_call.1} parent=11 // pred_check
          %p318 = pneg %p204
        $region34: #{tpu_custom_call.1} parent=11 // pred_check_branch
          %320 = sbr.rel (%p318) target = $region36
        $region35: #{tpu_custom_call.1} parent=11 // pred_region
          _
        $region36: #{tpu_custom_call.1} parent=11 // pred_fallthru
          _
        // Predicated region
        $region37: #{tpu_custom_call.1} parent=11 // pred_check
          %p321 = pneg %p225
        $region38: #{tpu_custom_call.1} parent=11 // pred_check_branch
          %323 = sbr.rel (%p321) target = $region40
        $region39: #{tpu_custom_call.1} parent=11 // pred_region
          _
        $region40: #{tpu_custom_call.1} parent=11 // pred_fallthru
          _
        // Predicated region
        $region41: #{tpu_custom_call.1} parent=11 // pred_check
          %p324 = pneg %p246
        $region42: #{tpu_custom_call.1} parent=11 // pred_check_branch
          %326 = sbr.rel (%p324) target = $region44
        $region43: #{tpu_custom_call.1} parent=11 // pred_region
          _
        $region44: #{tpu_custom_call.1} parent=11 // pred_fallthru
          _
      $region12: #{tpu_custom_call.1} parent=5 // pred_fallthru
        _
      %p327 = scmp.lt.s32.totalorder %s26, 2
      // Predicated region
      $region45: #{tpu_custom_call.1} parent=5 // pred_check
        %p328 = pneg %p327
      $region46: #{tpu_custom_call.1} parent=5 // pred_check_branch
        %330 = sbr.rel (%p328) target = $region48
      $region47: #{tpu_custom_call.1} parent=5 // pred_region
        // Predicated region
        $region49: #{tpu_custom_call.1} parent=47 // pred_check
          %p331 = pneg %p46
        $region50: #{tpu_custom_call.1} parent=47 // pred_check_branch
          %333 = sbr.rel (%p331) target = $region52
        $region51: #{tpu_custom_call.1} parent=47 // pred_region
          %s334 = sand.u32 %s36, 1
          %s335 = scalar_lea.sflag [#allocation3], %s334
          %s336 = sand.u32 %s36, 1
          %s337 = smul.addr %s336, 8
          %s338 = scalar_lea.vmem [#allocation2], %s337
          %s340 = ssub.s32 128, 128
          %341 = vsyncadd %s335, %s340
          %s342 = smul.addr %s26, 128
          %s343 = scalar_lea.hbm %s0, %s342
          %s345 = sshll.u32 %s338, 4
          %s346 = int_to_ptr.vmem [resolvable:$true] %s345
          %348 = dma.hbm_to_vmem [thread:$0]  %s343, 128, %s346, %s335
        $region52: #{tpu_custom_call.1} parent=47 // pred_fallthru
          _
        // Predicated region
        $region53: #{tpu_custom_call.1} parent=47 // pred_check
          %p349 = pneg %p72
        $region54: #{tpu_custom_call.1} parent=47 // pred_check_branch
          %351 = sbr.rel (%p349) target = $region56
        $region55: #{tpu_custom_call.1} parent=47 // pred_region
          %s352 = sand.u32 %s26, 1
          %s353 = scalar_lea.sflag [#allocation6], %s352
          %s354 = sand.u32 %s62, 1
          %s355 = smul.addr %s354, 8
          %s356 = scalar_lea.vmem [#allocation5], %s355
          %s358 = ssub.s32 128, 128
          %359 = vsyncadd %s353, %s358
          %s360 = smul.addr %s26, 128
          %s361 = scalar_lea.hbm %s1, %s360
          %s363 = sshll.u32 %s356, 4
          %s364 = int_to_ptr.vmem [resolvable:$true] %s363
          %366 = dma.hbm_to_vmem [thread:$0]  %s361, 128, %s364, %s353
        $region56: #{tpu_custom_call.1} parent=47 // pred_fallthru
          _
      $region48: #{tpu_custom_call.1} parent=5 // pred_fallthru
        _
      %p367 = scmp.le.s32.totalorder 1, %s26
      %p368 = scmp.lt.s32.totalorder %s26, 3
      %p369 = pnand %p367, %p368
      %p370 = pneg %p369
      // Predicated region
      $region57: #{tpu_custom_call.1} parent=5 // pred_check
        _
      $region58: #{tpu_custom_call.1} parent=5 // pred_check_branch
        %372 = sbr.rel (%p369) target = $region60
      $region59: #{tpu_custom_call.1} parent=5 // pred_region
        %s373 = ssub.s32 %s26, 1
        %s374 = sand.u32 %s39, 1
        %s375 = scalar_lea.sflag [#allocation3], %s374
        %s376 = sand.u32 %s39, 1
        %s377 = smul.addr %s376, 8
        %s378 = scalar_lea.vmem [#allocation2], %s377
        // Predicated region
        $region61: #{tpu_custom_call.1} parent=59 // pred_check
          %p379 = pneg %p52
        $region62: #{tpu_custom_call.1} parent=59 // pred_check_branch
          %381 = sbr.rel (%p379) target = $region64
        $region63: #{tpu_custom_call.1} parent=59 // pred_region
          %382 = dma.done %s375, 128
        $region64: #{tpu_custom_call.1} parent=59 // pred_fallthru
          _
        %s383 = sand.u32 %s31, 1
        %s384 = scalar_lea.sflag [#allocation6], %s383
        %s385 = sand.u32 %s65, 1
        %s386 = smul.addr %s385, 8
        %s387 = scalar_lea.vmem [#allocation5], %s386
        // Predicated region
        $region65: #{tpu_custom_call.1} parent=59 // pred_check
          %p388 = pneg %p78
        $region66: #{tpu_custom_call.1} parent=59 // pred_check_branch
          %390 = sbr.rel (%p388) target = $region68
        $region67: #{tpu_custom_call.1} parent=59 // pred_region
          %391 = dma.done %s384, 128
        $region68: #{tpu_custom_call.1} parent=59 // pred_fallthru
          _
        // Predicated region
        $region69: #{tpu_custom_call.1} parent=59 // pred_check
          %p392 = pneg %p99
        $region70: #{tpu_custom_call.1} parent=59 // pred_check_branch
          %394 = sbr.rel (%p392) target = $region72
        $region71: #{tpu_custom_call.1} parent=59 // pred_region
          %395 = dma.done [#allocation6], 128
        $region72: #{tpu_custom_call.1} parent=59 // pred_fallthru
          _
        // Predicated region
        $region73: #{tpu_custom_call.1} parent=59 // pred_check
          %p396 = pneg %p120
        $region74: #{tpu_custom_call.1} parent=59 // pred_check_branch
          %398 = sbr.rel (%p396) target = $region76
        $region75: #{tpu_custom_call.1} parent=59 // pred_region
          %399 = dma.done [#allocation9], 128
        $region76: #{tpu_custom_call.1} parent=59 // pred_fallthru
          _
        %s400 = sand.u32 %s39, 1
        %s401 = scalar_lea.sflag [#allocation3], %s400
        %s402 = sand.u32 %s39, 1
        %s403 = smul.addr %s402, 8
        %s404 = scalar_lea.vmem [#allocation2], %s403
        %p405 = pneg %p52
        %p406 = pneg %p49
        %s407 = sand.u32 %s31, 1
        %s408 = scalar_lea.sflag [#allocation6], %s407
        %s409 = sand.u32 %s65, 1
        %s410 = smul.addr %s409, 8
        %s411 = scalar_lea.vmem [#allocation5], %s410
        %p412 = pneg %p78
        %p413 = pneg %p75
        %p414 = pneg %p99
        %p415 = pneg %p96
        %p416 = pneg %p120
        %p417 = pneg %p117
        %p418 = pneg %p141
        %p419 = pneg %p138
        %p420 = pneg %p162
        %p421 = pneg %p159
        %p422 = pneg %p183
        %p423 = pneg %p180
        %p424 = pneg %p204
        %p425 = pneg %p201
        %p426 = pneg %p225
        %p427 = pneg %p222
        %p428 = pneg %p246
        %p429 = pneg %p243
        %p430 = pneg %p272
        %p431 = pneg %p269
        %s432 = sand.u32 %s259, 1
        %s433 = scalar_lea.sflag [#allocation4], %s432
        %s434 = sand.u32 %s259, 1
        %s435 = smul.addr %s434, 8
        %s436 = scalar_lea.vmem [#allocation10], %s435
        %v437 = vld [vmem:[%s378] sm:$0xff]
        %v438 = vld [vmem:[#allocation7] sm:$0xff]
        %v439 = vld [vmem:[#allocation8] sm:$0xff]
        %v440 = vld [vmem:[%s387] sm:$0xff]
        %v441 = vld [vmem:[%s4] sm:$0x1]
        %v442 = vmul.f32 %v437, %v437
        %vm443 = vcmask 261120
        %v444 = vsel %vm443, %v442, 0.0
        %445 = vadd.xlane.f32.xlu0 %v444
        %v446 = vpop.xlane.xlu0 %445
        %v447 = vrcp.pop 32.0
        %v448 = vmul.f32 %v446, %v447
        %v449 = vadd.f32 %v448, 1e-05
        %v450 = vrsqrt.pop %v449
        %v451 = vmul.f32 %v437, %v450
        %v453 = vlaneseq
        %v454 = vshrl.u32 %v453, 7
        %v455 = vsub.s32 0, %v454
        %v456 = vrot.slane %v441, %v455
        %v458 = vmul.f32 %v451, %v456
        %v459 = vld [vmem:[%s6] sm:$0xff]
        %v460 = vld [vmem:[%s6 + $0x8] sm:$0xff]
        %v461 = vld [vmem:[%s6 + $0x10] sm:$0xff]
        %v462 = vld [vmem:[%s6 + $0x18] sm:$0xff]
        %v464 = vsel %vm443, %v458, 0
        %466 = vmatprep.subr.mxu0 0.0
        %467 = vmatpush1.msra.mxu0 %v459
        %468 = vmatprep.subr.mxu0 0.0
        %469 = vmatpush1.msra.mxu0 %v460
        %470 = vmatprep.subr.mxu0 0.0
        %471 = vmatpush1.msra.mxu0 %v461
        %472 = vmatprep.subr.mxu0 0.0
        %473 = vmatpush1.msra.mxu0 %v462
        %474 = vmatprep.subr.mxu0 0.0
        %475 = vmatpush1.msra.mxu0 0.0
        %476 = vmatprep.subr.mxu0 0.0
        %477 = vmatpush1.msra.mxu0 0.0
        %478 = vmatprep.subr.mxu0 0.0
        %479 = vmatpush1.msra.mxu0 0.0
        %480 = vmatprep.subr.mxu0 0.0
        %481 = vmatpush1.msra.mxu0 0.0
        %482 = vmatprep.subr.mxu0 0.0
        %483 = vmatpush1.msra.mxu0 0.0
        %484 = vmatprep.subr.mxu0 0.0
        %485 = vmatpush1.msra.mxu0 0.0
        %486 = vmatprep.subr.mxu0 0.0
        %487 = vmatpush1.msra.mxu0 0.0
        %488 = vmatprep.subr.mxu0 0.0
        %489 = vmatpush1.msra.mxu0 0.0
        %490 = vmatprep.subr.mxu0 0.0
        %491 = vmatpush1.msra.mxu0 0.0
        %492 = vmatprep.subr.mxu0 0.0
        %493 = vmatpush1.msra.mxu0 0.0
        %494 = vmatprep.subr.mxu0 0.0
        %495 = vmatpush1.msra.mxu0 0.0
        %496 = vmatprep.subr.mxu0 0.0
        %497 = vmatpush1.msra.mxu0 0.0
        %498 = vmatprep.subr.mxu0 0.0
        %499 = vmatpush1.msra.mxu0 0.0
        %500 = vmatprep.subr.mxu0 0.0
        %501 = vmatpush1.msra.mxu0 0.0
        %502 = vmatprep.subr.mxu0 0.0
        %503 = vmatpush1.msra.mxu0 0.0
        %504 = vmatprep.subr.mxu0 0.0
        %505 = vmatpush1.msra.mxu0 0.0
        %506 = vmatprep.subr.mxu0 0.0
        %507 = vmatpush1.msra.mxu0 0.0
        %508 = vmatprep.subr.mxu0 0.0
        %509 = vmatpush1.msra.mxu0 0.0
        %510 = vmatprep.subr.mxu0 0.0
        %511 = vmatpush1.msra.mxu0 0.0
        %512 = vmatprep.subr.mxu0 0.0
        %513 = vmatpush1.msra.mxu0 0.0
        %514 = vmatprep.subr.mxu0 0.0
        %515 = vmatpush1.msra.mxu0 0.0
        %516 = vmatprep.subr.mxu0 0.0
        %517 = vmatpush1.msra.mxu0 0.0
        %518 = vmatprep.subr.mxu0 0.0
        %519 = vmatpush1.msra.mxu0 0.0
        %520 = vmatprep.subr.mxu0 0.0
        %521 = vmatpush1.msra.mxu0 0.0
        %522 = vmatprep.subr.mxu0 0.0
        %523 = vmatpush1.msra.mxu0 0.0
        %524 = vmatprep.subr.mxu0 0.0
        %525 = vmatpush1.msra.mxu0 0.0
        %526 = vmatprep.subr.mxu0 0.0
        %527 = vmatpush1.msra.mxu0 0.0
        %528 = vmatprep.subr.mxu0 0.0
        %529 = vmatpush1.msra.mxu0 0.0
        %530 = vmatprep.mubr.f32.mxu0 0.0
        %531 = vmatmul.mubr.f32.gmra.mrb[0].mxu0 %v464
        %v532 = vpop.f32.mrb[0].mxu0
        %v533 = vadd.f32 0.0, %v532
        %v534 = vpop.f32.mrb[0].mxu0
        %535 = vdwg.mxu0
        %537 = vrot.lane.b32.xlu0 %v438, 32
        %v538 = vpop.permute.xlu0 %537
        %v540 = vmul.f32 %v533, %v538
        %v541 = vsub.f32 0.0, %v533
        %543 = vrot.lane.b32.xlu0 %v541, 92
        %v544 = vpop.permute.xlu0 %543
        %547 = vrot.lane.b32.xlu0 %v533, 100
        %v548 = vpop.permute.xlu0 %547
        %vm550 = vcmask 31744
        %v551 = vsel %vm550, %v544, %v548
        %v552 = vmul.f32 %v551, %v439
        %554 = vrot.lane.b32.xlu0 %v552, 32
        %v555 = vpop.permute.xlu0 %554
        %v557 = vadd.f32 %v540, %v555
        %558 = vrot.lane.b32.xlu0 %v438, 40
        %v559 = vpop.permute.xlu0 %558
        %v561 = vmul.f32 %v533, %v559
        %562 = vrot.lane.b32.xlu0 %v541, 84
        %v563 = vpop.permute.xlu0 %562
        %565 = vrot.lane.b32.xlu0 %v533, 92
        %v566 = vpop.permute.xlu0 %565
        %v568 = vsel %vm550, %v563, %v566
        %v569 = vmul.f32 %v568, %v439
        %571 = vrot.lane.b32.xlu0 %v569, 40
        %v572 = vpop.permute.xlu0 %571
        %v574 = vadd.f32 %v561, %v572
        %v575 = vmul.f32 %v533, %v438
        %576 = vrot.lane.b32.xlu0 %v541, 124
        %v577 = vpop.permute.xlu0 %576
        %579 = vrot.lane.b32.xlu0 %v533, 4
        %v580 = vpop.permute.xlu0 %579
        %v582 = vsel %vm550, %v577, %v580
        %v583 = vmul.f32 %v582, %v439
        %v584 = vadd.f32 %v575, %v583
        %586 = vrot.lane.b32.xlu0 %v557, 96
        %v587 = vpop.permute.xlu0 %586
        %vm588 = vcmask 64512
        %v590 = vsel %vm588, %v584, 0
        %v592 = vsel %vm588, %v587, 0
        %594 = vmatprep.subr.mxu0 0.0
        %595 = vmatpush1.xpose.msra.mxu0 %v592
        %596 = vmatprep.subr.mxu0 0.0
        %597 = vmatpush1.xpose.msra.mxu0 0.0
        %598 = vmatprep.subr.mxu0 0.0
        %599 = vmatpush1.xpose.msra.mxu0 0.0
        %600 = vmatprep.subr.mxu0 0.0
        %601 = vmatpush1.xpose.msra.mxu0 0.0
        %602 = vmatprep.subr.mxu0 0.0
        %603 = vmatpush1.xpose.msra.mxu0 0.0
        %604 = vmatprep.subr.mxu0 0.0
        %605 = vmatpush1.xpose.msra.mxu0 0.0
        %606 = vmatprep.subr.mxu0 0.0
        %607 = vmatpush1.xpose.msra.mxu0 0.0
        %608 = vmatprep.subr.mxu0 0.0
        %609 = vmatpush1.xpose.msra.mxu0 0.0
        %610 = vmatprep.subr.mxu0 0.0
        %611 = vmatpush1.xpose.msra.mxu0 0.0
        %612 = vmatprep.subr.mxu0 0.0
        %613 = vmatpush1.xpose.msra.mxu0 0.0
        %614 = vmatprep.subr.mxu0 0.0
        %615 = vmatpush1.xpose.msra.mxu0 0.0
        %616 = vmatprep.subr.mxu0 0.0
        %617 = vmatpush1.xpose.msra.mxu0 0.0
        %618 = vmatprep.subr.mxu0 0.0
        %619 = vmatpush1.xpose.msra.mxu0 0.0
        %620 = vmatprep.subr.mxu0 0.0
        %621 = vmatpush1.xpose.msra.mxu0 0.0
        %622 = vmatprep.subr.mxu0 0.0
        %623 = vmatpush1.xpose.msra.mxu0 0.0
        %624 = vmatprep.subr.mxu0 0.0
        %625 = vmatpush1.xpose.msra.mxu0 0.0
        %626 = vmatprep.subr.mxu0 0.0
        %627 = vmatpush1.xpose.msra.mxu0 0.0
        %628 = vmatprep.subr.mxu0 0.0
        %629 = vmatpush1.xpose.msra.mxu0 0.0
        %630 = vmatprep.subr.mxu0 0.0
        %631 = vmatpush1.xpose.msra.mxu0 0.0
        %632 = vmatprep.subr.mxu0 0.0
        %633 = vmatpush1.xpose.msra.mxu0 0.0
        %634 = vmatprep.subr.mxu0 0.0
        %635 = vmatpush1.xpose.msra.mxu0 0.0
        %636 = vmatprep.subr.mxu0 0.0
        %637 = vmatpush1.xpose.msra.mxu0 0.0
        %638 = vmatprep.subr.mxu0 0.0
        %639 = vmatpush1.xpose.msra.mxu0 0.0
        %640 = vmatprep.subr.mxu0 0.0
        %641 = vmatpush1.xpose.msra.mxu0 0.0
        %642 = vmatprep.subr.mxu0 0.0
        %643 = vmatpush1.xpose.msra.mxu0 0.0
        %644 = vmatprep.subr.mxu0 0.0
        %645 = vmatpush1.xpose.msra.mxu0 0.0
        %646 = vmatprep.subr.mxu0 0.0
        %647 = vmatpush1.xpose.msra.mxu0 0.0
        %648 = vmatprep.subr.mxu0 0.0
        %649 = vmatpush1.xpose.msra.mxu0 0.0
        %650 = vmatprep.subr.mxu0 0.0
        %651 = vmatpush1.xpose.msra.mxu0 0.0
        %652 = vmatprep.subr.mxu0 0.0
        %653 = vmatpush1.xpose.msra.mxu0 0.0
        %654 = vmatprep.subr.mxu0 0.0
        %655 = vmatpush1.xpose.msra.mxu0 0.0
        %656 = vmatprep.subr.mxu0 0.0
        %657 = vmatpush1.xpose.msra.mxu0 0.0
        %658 = vmatprep.mubr.f32.mxu0 0.0
        %659 = vmatmul.mubr.f32.gmra.mrb[0].mxu0 %v590
        %v660 = vpop.f32.mrb[0].mxu0
        %v661 = vadd.f32 0.0, %v660
        %v662 = vpop.f32.mrb[0].mxu0
        %663 = vdwg.mxu0
        %v664 = vmul.f32 %v661, 0.35355338
        %v665 = vadd.f32 %v664, %v440
        %v666 = vsel %vm588, %v665, -inf
        %667 = vmax.xlane.f32.xlu0 %v666
        %v668 = vpop.xlane.xlu0 %667
        %v669 = vsub.f32 %v665, %v668
        %v670 = vmul.f32 %v669, 1.442695
        %v671 = vpow.pop %v670
        %v672 = vsel %vm588, %v671, 0.0
        %673 = vadd.xlane.f32.xlu0 %v672
        %v674 = vpop.xlane.xlu0 %673
        %v675 = vrcp.pop %v674
        %v676 = vmul.f32 %v671, %v675
        %677 = vrot.lane.b32.xlu0 %v533, 80
        %v678 = vpop.permute.xlu0 %677
        %v681 = vsel %vm588, %v676, 0
        %683 = vmatprep.subr.mxu0 0.0
        %684 = vmatpush1.msra.mxu0 %v678
        %685 = vmatprep.subr.mxu0 0.0
        %686 = vmatpush1.msra.mxu0 0.0
        %687 = vmatprep.subr.mxu0 0.0
        %688 = vmatpush1.msra.mxu0 0.0
        %689 = vmatprep.subr.mxu0 0.0
        %690 = vmatpush1.msra.mxu0 0.0
        %691 = vmatprep.subr.mxu0 0.0
        %692 = vmatpush1.msra.mxu0 0.0
        %693 = vmatprep.subr.mxu0 0.0
        %694 = vmatpush1.msra.mxu0 0.0
        %695 = vmatprep.subr.mxu0 0.0
        %696 = vmatpush1.msra.mxu0 0.0
        %697 = vmatprep.subr.mxu0 0.0
        %698 = vmatpush1.msra.mxu0 0.0
        %699 = vmatprep.subr.mxu0 0.0
        %700 = vmatpush1.msra.mxu0 0.0
        %701 = vmatprep.subr.mxu0 0.0
        %702 = vmatpush1.msra.mxu0 0.0
        %703 = vmatprep.subr.mxu0 0.0
        %704 = vmatpush1.msra.mxu0 0.0
        %705 = vmatprep.subr.mxu0 0.0
        %706 = vmatpush1.msra.mxu0 0.0
        %707 = vmatprep.subr.mxu0 0.0
        %708 = vmatpush1.msra.mxu0 0.0
        %709 = vmatprep.subr.mxu0 0.0
        %710 = vmatpush1.msra.mxu0 0.0
        %711 = vmatprep.subr.mxu0 0.0
        %712 = vmatpush1.msra.mxu0 0.0
        %713 = vmatprep.subr.mxu0 0.0
        %714 = vmatpush1.msra.mxu0 0.0
        %715 = vmatprep.subr.mxu0 0.0
        %716 = vmatpush1.msra.mxu0 0.0
        %717 = vmatprep.subr.mxu0 0.0
        %718 = vmatpush1.msra.mxu0 0.0
        %719 = vmatprep.subr.mxu0 0.0
        %720 = vmatpush1.msra.mxu0 0.0
        %721 = vmatprep.subr.mxu0 0.0
        %722 = vmatpush1.msra.mxu0 0.0
        %723 = vmatprep.subr.mxu0 0.0
        %724 = vmatpush1.msra.mxu0 0.0
        %725 = vmatprep.subr.mxu0 0.0
        %726 = vmatpush1.msra.mxu0 0.0
        %727 = vmatprep.subr.mxu0 0.0
        %728 = vmatpush1.msra.mxu0 0.0
        %729 = vmatprep.subr.mxu0 0.0
        %730 = vmatpush1.msra.mxu0 0.0
        %731 = vmatprep.subr.mxu0 0.0
        %732 = vmatpush1.msra.mxu0 0.0
        %733 = vmatprep.subr.mxu0 0.0
        %734 = vmatpush1.msra.mxu0 0.0
        %735 = vmatprep.subr.mxu0 0.0
        %736 = vmatpush1.msra.mxu0 0.0
        %737 = vmatprep.subr.mxu0 0.0
        %738 = vmatpush1.msra.mxu0 0.0
        %739 = vmatprep.subr.mxu0 0.0
        %740 = vmatpush1.msra.mxu0 0.0
        %741 = vmatprep.subr.mxu0 0.0
        %742 = vmatpush1.msra.mxu0 0.0
        %743 = vmatprep.subr.mxu0 0.0
        %744 = vmatpush1.msra.mxu0 0.0
        %745 = vmatprep.subr.mxu0 0.0
        %746 = vmatpush1.msra.mxu0 0.0
        %747 = vmatprep.mubr.f32.mxu0 0.0
        %748 = vmatmul.mubr.f32.gmra.mrb[0].mxu0 %v681
        %v749 = vpop.f32.mrb[0].mxu0
        %v750 = vadd.f32 0.0, %v749
        %v751 = vpop.f32.mrb[0].mxu0
        %752 = vdwg.mxu0
        %753 = vrot.lane.b32.xlu0 %v438, 8
        %v754 = vpop.permute.xlu0 %753
        %v756 = vmul.f32 %v533, %v754
        %757 = vrot.lane.b32.xlu0 %v541, 116
        %v758 = vpop.permute.xlu0 %757
        %760 = vrot.lane.b32.xlu0 %v533, 124
        %v761 = vpop.permute.xlu0 %760
        %v763 = vsel %vm550, %v758, %v761
        %v764 = vmul.f32 %v763, %v439
        %766 = vrot.lane.b32.xlu0 %v764, 8
        %v767 = vpop.permute.xlu0 %766
        %v769 = vadd.f32 %v756, %v767
        %771 = vrot.lane.b32.xlu0 %v769, 120
        %v772 = vpop.permute.xlu0 %771
        %v773 = vsel %vm588, %v772, 0
        %775 = vmatprep.subr.mxu0 0.0
        %776 = vmatpush1.xpose.msra.mxu0 %v592
        %777 = vmatprep.subr.mxu0 0.0
        %778 = vmatpush1.xpose.msra.mxu0 0.0
        %779 = vmatprep.subr.mxu0 0.0
        %780 = vmatpush1.xpose.msra.mxu0 0.0
        %781 = vmatprep.subr.mxu0 0.0
        %782 = vmatpush1.xpose.msra.mxu0 0.0
        %783 = vmatprep.subr.mxu0 0.0
        %784 = vmatpush1.xpose.msra.mxu0 0.0
        %785 = vmatprep.subr.mxu0 0.0
        %786 = vmatpush1.xpose.msra.mxu0 0.0
        %787 = vmatprep.subr.mxu0 0.0
        %788 = vmatpush1.xpose.msra.mxu0 0.0
        %789 = vmatprep.subr.mxu0 0.0
        %790 = vmatpush1.xpose.msra.mxu0 0.0
        %791 = vmatprep.subr.mxu0 0.0
        %792 = vmatpush1.xpose.msra.mxu0 0.0
        %793 = vmatprep.subr.mxu0 0.0
        %794 = vmatpush1.xpose.msra.mxu0 0.0
        %795 = vmatprep.subr.mxu0 0.0
        %796 = vmatpush1.xpose.msra.mxu0 0.0
        %797 = vmatprep.subr.mxu0 0.0
        %798 = vmatpush1.xpose.msra.mxu0 0.0
        %799 = vmatprep.subr.mxu0 0.0
        %800 = vmatpush1.xpose.msra.mxu0 0.0
        %801 = vmatprep.subr.mxu0 0.0
        %802 = vmatpush1.xpose.msra.mxu0 0.0
        %803 = vmatprep.subr.mxu0 0.0
        %804 = vmatpush1.xpose.msra.mxu0 0.0
        %805 = vmatprep.subr.mxu0 0.0
        %806 = vmatpush1.xpose.msra.mxu0 0.0
        %807 = vmatprep.subr.mxu0 0.0
        %808 = vmatpush1.xpose.msra.mxu0 0.0
        %809 = vmatprep.subr.mxu0 0.0
        %810 = vmatpush1.xpose.msra.mxu0 0.0
        %811 = vmatprep.subr.mxu0 0.0
        %812 = vmatpush1.xpose.msra.mxu0 0.0
        %813 = vmatprep.subr.mxu0 0.0
        %814 = vmatpush1.xpose.msra.mxu0 0.0
        %815 = vmatprep.subr.mxu0 0.0
        %816 = vmatpush1.xpose.msra.mxu0 0.0
        %817 = vmatprep.subr.mxu0 0.0
        %818 = vmatpush1.xpose.msra.mxu0 0.0
        %819 = vmatprep.subr.mxu0 0.0
        %820 = vmatpush1.xpose.msra.mxu0 0.0
        %821 = vmatprep.subr.mxu0 0.0
        %822 = vmatpush1.xpose.msra.mxu0 0.0
        %823 = vmatprep.subr.mxu0 0.0
        %824 = vmatpush1.xpose.msra.mxu0 0.0
        %825 = vmatprep.subr.mxu0 0.0
        %826 = vmatpush1.xpose.msra.mxu0 0.0
        %827 = vmatprep.subr.mxu0 0.0
        %828 = vmatpush1.xpose.msra.mxu0 0.0
        %829 = vmatprep.subr.mxu0 0.0
        %830 = vmatpush1.xpose.msra.mxu0 0.0
        %831 = vmatprep.subr.mxu0 0.0
        %832 = vmatpush1.xpose.msra.mxu0 0.0
        %833 = vmatprep.subr.mxu0 0.0
        %834 = vmatpush1.xpose.msra.mxu0 0.0
        %835 = vmatprep.subr.mxu0 0.0
        %836 = vmatpush1.xpose.msra.mxu0 0.0
        %837 = vmatprep.subr.mxu0 0.0
        %838 = vmatpush1.xpose.msra.mxu0 0.0
        %839 = vmatprep.mubr.f32.mxu0 0.0
        %840 = vmatmul.mubr.f32.gmra.mrb[0].mxu0 %v773
        %v841 = vpop.f32.mrb[0].mxu0
        %v842 = vadd.f32 0.0, %v841
        %v843 = vpop.f32.mrb[0].mxu0
        %844 = vdwg.mxu0
        %v845 = vmul.f32 %v842, 0.35355338
        %v846 = vadd.f32 %v845, %v440
        %v847 = vsel %vm588, %v846, -inf
        %848 = vmax.xlane.f32.xlu0 %v847
        %v849 = vpop.xlane.xlu0 %848
        %v850 = vsub.f32 %v846, %v849
        %v851 = vmul.f32 %v850, 1.442695
        %v852 = vpow.pop %v851
        %v853 = vsel %vm588, %v852, 0.0
        %854 = vadd.xlane.f32.xlu0 %v853
        %v855 = vpop.xlane.xlu0 %854
        %v856 = vrcp.pop %v855
        %v857 = vmul.f32 %v852, %v856
        %v859 = vsel %vm588, %v857, 0
        %861 = vmatprep.subr.mxu0 0.0
        %862 = vmatpush1.msra.mxu0 %v678
        %863 = vmatprep.subr.mxu0 0.0
        %864 = vmatpush1.msra.mxu0 0.0
        %865 = vmatprep.subr.mxu0 0.0
        %866 = vmatpush1.msra.mxu0 0.0
        %867 = vmatprep.subr.mxu0 0.0
        %868 = vmatpush1.msra.mxu0 0.0
        %869 = vmatprep.subr.mxu0 0.0
        %870 = vmatpush1.msra.mxu0 0.0
        %871 = vmatprep.subr.mxu0 0.0
        %872 = vmatpush1.msra.mxu0 0.0
        %873 = vmatprep.subr.mxu0 0.0
        %874 = vmatpush1.msra.mxu0 0.0
        %875 = vmatprep.subr.mxu0 0.0
        %876 = vmatpush1.msra.mxu0 0.0
        %877 = vmatprep.subr.mxu0 0.0
        %878 = vmatpush1.msra.mxu0 0.0
        %879 = vmatprep.subr.mxu0 0.0
        %880 = vmatpush1.msra.mxu0 0.0
        %881 = vmatprep.subr.mxu0 0.0
        %882 = vmatpush1.msra.mxu0 0.0
        %883 = vmatprep.subr.mxu0 0.0
        %884 = vmatpush1.msra.mxu0 0.0
        %885 = vmatprep.subr.mxu0 0.0
        %886 = vmatpush1.msra.mxu0 0.0
        %887 = vmatprep.subr.mxu0 0.0
        %888 = vmatpush1.msra.mxu0 0.0
        %889 = vmatprep.subr.mxu0 0.0
        %890 = vmatpush1.msra.mxu0 0.0
        %891 = vmatprep.subr.mxu0 0.0
        %892 = vmatpush1.msra.mxu0 0.0
        %893 = vmatprep.subr.mxu0 0.0
        %894 = vmatpush1.msra.mxu0 0.0
        %895 = vmatprep.subr.mxu0 0.0
        %896 = vmatpush1.msra.mxu0 0.0
        %897 = vmatprep.subr.mxu0 0.0
        %898 = vmatpush1.msra.mxu0 0.0
        %899 = vmatprep.subr.mxu0 0.0
        %900 = vmatpush1.msra.mxu0 0.0
        %901 = vmatprep.subr.mxu0 0.0
        %902 = vmatpush1.msra.mxu0 0.0
        %903 = vmatprep.subr.mxu0 0.0
        %904 = vmatpush1.msra.mxu0 0.0
        %905 = vmatprep.subr.mxu0 0.0
        %906 = vmatpush1.msra.mxu0 0.0
        %907 = vmatprep.subr.mxu0 0.0
        %908 = vmatpush1.msra.mxu0 0.0
        %909 = vmatprep.subr.mxu0 0.0
        %910 = vmatpush1.msra.mxu0 0.0
        %911 = vmatprep.subr.mxu0 0.0
        %912 = vmatpush1.msra.mxu0 0.0
        %913 = vmatprep.subr.mxu0 0.0
        %914 = vmatpush1.msra.mxu0 0.0
        %915 = vmatprep.subr.mxu0 0.0
        %916 = vmatpush1.msra.mxu0 0.0
        %917 = vmatprep.subr.mxu0 0.0
        %918 = vmatpush1.msra.mxu0 0.0
        %919 = vmatprep.subr.mxu0 0.0
        %920 = vmatpush1.msra.mxu0 0.0
        %921 = vmatprep.subr.mxu0 0.0
        %922 = vmatpush1.msra.mxu0 0.0
        %923 = vmatprep.subr.mxu0 0.0
        %924 = vmatpush1.msra.mxu0 0.0
        %925 = vmatprep.mubr.f32.mxu0 0.0
        %926 = vmatmul.mubr.f32.gmra.mrb[0].mxu0 %v859
        %v927 = vpop.f32.mrb[0].mxu0
        %v928 = vadd.f32 0.0, %v927
        %v929 = vpop.f32.mrb[0].mxu0
        %930 = vdwg.mxu0
        %931 = vrot.lane.b32.xlu0 %v438, 16
        %v932 = vpop.permute.xlu0 %931
        %v934 = vmul.f32 %v533, %v932
        %935 = vrot.lane.b32.xlu0 %v541, 108
        %v936 = vpop.permute.xlu0 %935
        %938 = vrot.lane.b32.xlu0 %v533, 116
        %v939 = vpop.permute.xlu0 %938
        %v941 = vsel %vm550, %v936, %v939
        %v942 = vmul.f32 %v941, %v439
        %944 = vrot.lane.b32.xlu0 %v942, 16
        %v945 = vpop.permute.xlu0 %944
        %v947 = vadd.f32 %v934, %v945
        %949 = vrot.lane.b32.xlu0 %v947, 112
        %v950 = vpop.permute.xlu0 %949
        %952 = vrot.lane.b32.xlu0 %v574, 88
        %v953 = vpop.permute.xlu0 %952
        %v954 = vsel %vm588, %v950, 0
        %v956 = vsel %vm588, %v953, 0
        %958 = vmatprep.subr.mxu0 0.0
        %959 = vmatpush1.xpose.msra.mxu0 %v956
        %960 = vmatprep.subr.mxu0 0.0
        %961 = vmatpush1.xpose.msra.mxu0 0.0
        %962 = vmatprep.subr.mxu0 0.0
        %963 = vmatpush1.xpose.msra.mxu0 0.0
        %964 = vmatprep.subr.mxu0 0.0
        %965 = vmatpush1.xpose.msra.mxu0 0.0
        %966 = vmatprep.subr.mxu0 0.0
        %967 = vmatpush1.xpose.msra.mxu0 0.0
        %968 = vmatprep.subr.mxu0 0.0
        %969 = vmatpush1.xpose.msra.mxu0 0.0
        %970 = vmatprep.subr.mxu0 0.0
        %971 = vmatpush1.xpose.msra.mxu0 0.0
        %972 = vmatprep.subr.mxu0 0.0
        %973 = vmatpush1.xpose.msra.mxu0 0.0
        %974 = vmatprep.subr.mxu0 0.0
        %975 = vmatpush1.xpose.msra.mxu0 0.0
        %976 = vmatprep.subr.mxu0 0.0
        %977 = vmatpush1.xpose.msra.mxu0 0.0
        %978 = vmatprep.subr.mxu0 0.0
        %979 = vmatpush1.xpose.msra.mxu0 0.0
        %980 = vmatprep.subr.mxu0 0.0
        %981 = vmatpush1.xpose.msra.mxu0 0.0
        %982 = vmatprep.subr.mxu0 0.0
        %983 = vmatpush1.xpose.msra.mxu0 0.0
        %984 = vmatprep.subr.mxu0 0.0
        %985 = vmatpush1.xpose.msra.mxu0 0.0
        %986 = vmatprep.subr.mxu0 0.0
        %987 = vmatpush1.xpose.msra.mxu0 0.0
        %988 = vmatprep.subr.mxu0 0.0
        %989 = vmatpush1.xpose.msra.mxu0 0.0
        %990 = vmatprep.subr.mxu0 0.0
        %991 = vmatpush1.xpose.msra.mxu0 0.0
        %992 = vmatprep.subr.mxu0 0.0
        %993 = vmatpush1.xpose.msra.mxu0 0.0
        %994 = vmatprep.subr.mxu0 0.0
        %995 = vmatpush1.xpose.msra.mxu0 0.0
        %996 = vmatprep.subr.mxu0 0.0
        %997 = vmatpush1.xpose.msra.mxu0 0.0
        %998 = vmatprep.subr.mxu0 0.0
        %999 = vmatpush1.xpose.msra.mxu0 0.0
        %1000 = vmatprep.subr.mxu0 0.0
        %1001 = vmatpush1.xpose.msra.mxu0 0.0
        %1002 = vmatprep.subr.mxu0 0.0
        %1003 = vmatpush1.xpose.msra.mxu0 0.0
        %1004 = vmatprep.subr.mxu0 0.0
        %1005 = vmatpush1.xpose.msra.mxu0 0.0
        %1006 = vmatprep.subr.mxu0 0.0
        %1007 = vmatpush1.xpose.msra.mxu0 0.0
        %1008 = vmatprep.subr.mxu0 0.0
        %1009 = vmatpush1.xpose.msra.mxu0 0.0
        %1010 = vmatprep.subr.mxu0 0.0
        %1011 = vmatpush1.xpose.msra.mxu0 0.0
        %1012 = vmatprep.subr.mxu0 0.0
        %1013 = vmatpush1.xpose.msra.mxu0 0.0
        %1014 = vmatprep.subr.mxu0 0.0
        %1015 = vmatpush1.xpose.msra.mxu0 0.0
        %1016 = vmatprep.subr.mxu0 0.0
        %1017 = vmatpush1.xpose.msra.mxu0 0.0
        %1018 = vmatprep.subr.mxu0 0.0
        %1019 = vmatpush1.xpose.msra.mxu0 0.0
        %1020 = vmatprep.subr.mxu0 0.0
        %1021 = vmatpush1.xpose.msra.mxu0 0.0
        %1022 = vmatprep.mubr.f32.mxu0 0.0
        %1023 = vmatmul.mubr.f32.gmra.mrb[0].mxu0 %v954
        %v1024 = vpop.f32.mrb[0].mxu0
        %v1025 = vadd.f32 0.0, %v1024
        %v1026 = vpop.f32.mrb[0].mxu0
        %1027 = vdwg.mxu0
        %v1028 = vmul.f32 %v1025, 0.35355338
        %v1029 = vadd.f32 %v1028, %v440
        %v1030 = vsel %vm588, %v1029, -inf
        %1031 = vmax.xlane.f32.xlu0 %v1030
        %v1032 = vpop.xlane.xlu0 %1031
        %v1033 = vsub.f32 %v1029, %v1032
        %v1034 = vmul.f32 %v1033, 1.442695
        %v1035 = vpow.pop %v1034
        %v1036 = vsel %vm588, %v1035, 0.0
        %1037 = vadd.xlane.f32.xlu0 %v1036
        %v1038 = vpop.xlane.xlu0 %1037
        %v1039 = vrcp.pop %v1038
        %v1040 = vmul.f32 %v1035, %v1039
        %1041 = vrot.lane.b32.xlu0 %v533, 72
        %v1042 = vpop.permute.xlu0 %1041
        %v1045 = vsel %vm588, %v1040, 0
        %1047 = vmatprep.subr.mxu0 0.0
        %1048 = vmatpush1.msra.mxu0 %v1042
        %1049 = vmatprep.subr.mxu0 0.0
        %1050 = vmatpush1.msra.mxu0 0.0
        %1051 = vmatprep.subr.mxu0 0.0
        %1052 = vmatpush1.msra.mxu0 0.0
        %1053 = vmatprep.subr.mxu0 0.0
        %1054 = vmatpush1.msra.mxu0 0.0
        %1055 = vmatprep.subr.mxu0 0.0
        %1056 = vmatpush1.msra.mxu0 0.0
        %1057 = vmatprep.subr.mxu0 0.0
        %1058 = vmatpush1.msra.mxu0 0.0
        %1059 = vmatprep.subr.mxu0 0.0
        %1060 = vmatpush1.msra.mxu0 0.0
        %1061 = vmatprep.subr.mxu0 0.0
        %1062 = vmatpush1.msra.mxu0 0.0
        %1063 = vmatprep.subr.mxu0 0.0
        %1064 = vmatpush1.msra.mxu0 0.0
        %1065 = vmatprep.subr.mxu0 0.0
        %1066 = vmatpush1.msra.mxu0 0.0
        %1067 = vmatprep.subr.mxu0 0.0
        %1068 = vmatpush1.msra.mxu0 0.0
        %1069 = vmatprep.subr.mxu0 0.0
        %1070 = vmatpush1.msra.mxu0 0.0
        %1071 = vmatprep.subr.mxu0 0.0
        %1072 = vmatpush1.msra.mxu0 0.0
        %1073 = vmatprep.subr.mxu0 0.0
        %1074 = vmatpush1.msra.mxu0 0.0
        %1075 = vmatprep.subr.mxu0 0.0
        %1076 = vmatpush1.msra.mxu0 0.0
        %1077 = vmatprep.subr.mxu0 0.0
        %1078 = vmatpush1.msra.mxu0 0.0
        %1079 = vmatprep.subr.mxu0 0.0
        %1080 = vmatpush1.msra.mxu0 0.0
        %1081 = vmatprep.subr.mxu0 0.0
        %1082 = vmatpush1.msra.mxu0 0.0
        %1083 = vmatprep.subr.mxu0 0.0
        %1084 = vmatpush1.msra.mxu0 0.0
        %1085 = vmatprep.subr.mxu0 0.0
        %1086 = vmatpush1.msra.mxu0 0.0
        %1087 = vmatprep.subr.mxu0 0.0
        %1088 = vmatpush1.msra.mxu0 0.0
        %1089 = vmatprep.subr.mxu0 0.0
        %1090 = vmatpush1.msra.mxu0 0.0
        %1091 = vmatprep.subr.mxu0 0.0
        %1092 = vmatpush1.msra.mxu0 0.0
        %1093 = vmatprep.subr.mxu0 0.0
        %1094 = vmatpush1.msra.mxu0 0.0
        %1095 = vmatprep.subr.mxu0 0.0
        %1096 = vmatpush1.msra.mxu0 0.0
        %1097 = vmatprep.subr.mxu0 0.0
        %1098 = vmatpush1.msra.mxu0 0.0
        %1099 = vmatprep.subr.mxu0 0.0
        %1100 = vmatpush1.msra.mxu0 0.0
        %1101 = vmatprep.subr.mxu0 0.0
        %1102 = vmatpush1.msra.mxu0 0.0
        %1103 = vmatprep.subr.mxu0 0.0
        %1104 = vmatpush1.msra.mxu0 0.0
        %1105 = vmatprep.subr.mxu0 0.0
        %1106 = vmatpush1.msra.mxu0 0.0
        %1107 = vmatprep.subr.mxu0 0.0
        %1108 = vmatpush1.msra.mxu0 0.0
        %1109 = vmatprep.subr.mxu0 0.0
        %1110 = vmatpush1.msra.mxu0 0.0
        %1111 = vmatprep.mubr.f32.mxu0 0.0
        %1112 = vmatmul.mubr.f32.gmra.mrb[0].mxu0 %v1045
        %v1113 = vpop.f32.mrb[0].mxu0
        %v1114 = vadd.f32 0.0, %v1113
        %v1115 = vpop.f32.mrb[0].mxu0
        %1116 = vdwg.mxu0
        %1117 = vrot.lane.b32.xlu0 %v438, 24
        %v1118 = vpop.permute.xlu0 %1117
        %v1120 = vmul.f32 %v533, %v1118
        %1121 = vrot.lane.b32.xlu0 %v541, 100
        %v1122 = vpop.permute.xlu0 %1121
        %1124 = vrot.lane.b32.xlu0 %v533, 108
        %v1125 = vpop.permute.xlu0 %1124
        %v1127 = vsel %vm550, %v1122, %v1125
        %v1128 = vmul.f32 %v1127, %v439
        %1130 = vrot.lane.b32.xlu0 %v1128, 24
        %v1131 = vpop.permute.xlu0 %1130
        %v1133 = vadd.f32 %v1120, %v1131
        %1135 = vrot.lane.b32.xlu0 %v1133, 104
        %v1136 = vpop.permute.xlu0 %1135
        %v1137 = vsel %vm588, %v1136, 0
        %1139 = vmatprep.subr.mxu0 0.0
        %1140 = vmatpush1.xpose.msra.mxu0 %v956
        %1141 = vmatprep.subr.mxu0 0.0
        %1142 = vmatpush1.xpose.msra.mxu0 0.0
        %1143 = vmatprep.subr.mxu0 0.0
        %1144 = vmatpush1.xpose.msra.mxu0 0.0
        %1145 = vmatprep.subr.mxu0 0.0
        %1146 = vmatpush1.xpose.msra.mxu0 0.0
        %1147 = vmatprep.subr.mxu0 0.0
        %1148 = vmatpush1.xpose.msra.mxu0 0.0
        %1149 = vmatprep.subr.mxu0 0.0
        %1150 = vmatpush1.xpose.msra.mxu0 0.0
        %1151 = vmatprep.subr.mxu0 0.0
        %1152 = vmatpush1.xpose.msra.mxu0 0.0
        %1153 = vmatprep.subr.mxu0 0.0
        %1154 = vmatpush1.xpose.msra.mxu0 0.0
        %1155 = vmatprep.subr.mxu0 0.0
        %1156 = vmatpush1.xpose.msra.mxu0 0.0
        %1157 = vmatprep.subr.mxu0 0.0
        %1158 = vmatpush1.xpose.msra.mxu0 0.0
        %1159 = vmatprep.subr.mxu0 0.0
        %1160 = vmatpush1.xpose.msra.mxu0 0.0
        %1161 = vmatprep.subr.mxu0 0.0
        %1162 = vmatpush1.xpose.msra.mxu0 0.0
        %1163 = vmatprep.subr.mxu0 0.0
        %1164 = vmatpush1.xpose.msra.mxu0 0.0
        %1165 = vmatprep.subr.mxu0 0.0
        %1166 = vmatpush1.xpose.msra.mxu0 0.0
        %1167 = vmatprep.subr.mxu0 0.0
        %1168 = vmatpush1.xpose.msra.mxu0 0.0
        %1169 = vmatprep.subr.mxu0 0.0
        %1170 = vmatpush1.xpose.msra.mxu0 0.0
        %1171 = vmatprep.subr.mxu0 0.0
        %1172 = vmatpush1.xpose.msra.mxu0 0.0
        %1173 = vmatprep.subr.mxu0 0.0
        %1174 = vmatpush1.xpose.msra.mxu0 0.0
        %1175 = vmatprep.subr.mxu0 0.0
        %1176 = vmatpush1.xpose.msra.mxu0 0.0
        %1177 = vmatprep.subr.mxu0 0.0
        %1178 = vmatpush1.xpose.msra.mxu0 0.0
        %1179 = vmatprep.subr.mxu0 0.0
        %1180 = vmatpush1.xpose.msra.mxu0 0.0
        %1181 = vmatprep.subr.mxu0 0.0
        %1182 = vmatpush1.xpose.msra.mxu0 0.0
        %1183 = vmatprep.subr.mxu0 0.0
        %1184 = vmatpush1.xpose.msra.mxu0 0.0
        %1185 = vmatprep.subr.mxu0 0.0
        %1186 = vmatpush1.xpose.msra.mxu0 0.0
        %1187 = vmatprep.subr.mxu0 0.0
        %1188 = vmatpush1.xpose.msra.mxu0 0.0
        %1189 = vmatprep.subr.mxu0 0.0
        %1190 = vmatpush1.xpose.msra.mxu0 0.0
        %1191 = vmatprep.subr.mxu0 0.0
        %1192 = vmatpush1.xpose.msra.mxu0 0.0
        %1193 = vmatprep.subr.mxu0 0.0
        %1194 = vmatpush1.xpose.msra.mxu0 0.0
        %1195 = vmatprep.subr.mxu0 0.0
        %1196 = vmatpush1.xpose.msra.mxu0 0.0
        %1197 = vmatprep.subr.mxu0 0.0
        %1198 = vmatpush1.xpose.msra.mxu0 0.0
        %1199 = vmatprep.subr.mxu0 0.0
        %1200 = vmatpush1.xpose.msra.mxu0 0.0
        %1201 = vmatprep.subr.mxu0 0.0
        %1202 = vmatpush1.xpose.msra.mxu0 0.0
        %1203 = vmatprep.mubr.f32.mxu0 0.0
        %1204 = vmatmul.mubr.f32.gmra.mrb[0].mxu0 %v1137
        %v1205 = vpop.f32.mrb[0].mxu0
        %v1206 = vadd.f32 0.0, %v1205
        %v1207 = vpop.f32.mrb[0].mxu0
        %1208 = vdwg.mxu0
        %v1209 = vmul.f32 %v1206, 0.35355338
        %v1210 = vadd.f32 %v1209, %v440
        %v1211 = vsel %vm588, %v1210, -inf
        %1212 = vmax.xlane.f32.xlu0 %v1211
        %v1213 = vpop.xlane.xlu0 %1212
        %v1214 = vsub.f32 %v1210, %v1213
        %v1215 = vmul.f32 %v1214, 1.442695
        %v1216 = vpow.pop %v1215
        %v1217 = vsel %vm588, %v1216, 0.0
        %1218 = vadd.xlane.f32.xlu0 %v1217
        %v1219 = vpop.xlane.xlu0 %1218
        %v1220 = vrcp.pop %v1219
        %v1221 = vmul.f32 %v1216, %v1220
        %v1223 = vsel %vm588, %v1221, 0
        %1225 = vmatprep.subr.mxu0 0.0
        %1226 = vmatpush1.msra.mxu0 %v1042
        %1227 = vmatprep.subr.mxu0 0.0
        %1228 = vmatpush1.msra.mxu0 0.0
        %1229 = vmatprep.subr.mxu0 0.0
        %1230 = vmatpush1.msra.mxu0 0.0
        %1231 = vmatprep.subr.mxu0 0.0
        %1232 = vmatpush1.msra.mxu0 0.0
        %1233 = vmatprep.subr.mxu0 0.0
        %1234 = vmatpush1.msra.mxu0 0.0
        %1235 = vmatprep.subr.mxu0 0.0
        %1236 = vmatpush1.msra.mxu0 0.0
        %1237 = vmatprep.subr.mxu0 0.0
        %1238 = vmatpush1.msra.mxu0 0.0
        %1239 = vmatprep.subr.mxu0 0.0
        %1240 = vmatpush1.msra.mxu0 0.0
        %1241 = vmatprep.subr.mxu0 0.0
        %1242 = vmatpush1.msra.mxu0 0.0
        %1243 = vmatprep.subr.mxu0 0.0
        %1244 = vmatpush1.msra.mxu0 0.0
        %1245 = vmatprep.subr.mxu0 0.0
        %1246 = vmatpush1.msra.mxu0 0.0
        %1247 = vmatprep.subr.mxu0 0.0
        %1248 = vmatpush1.msra.mxu0 0.0
        %1249 = vmatprep.subr.mxu0 0.0
        %1250 = vmatpush1.msra.mxu0 0.0
        %1251 = vmatprep.subr.mxu0 0.0
        %1252 = vmatpush1.msra.mxu0 0.0
        %1253 = vmatprep.subr.mxu0 0.0
        %1254 = vmatpush1.msra.mxu0 0.0
        %1255 = vmatprep.subr.mxu0 0.0
        %1256 = vmatpush1.msra.mxu0 0.0
        %1257 = vmatprep.subr.mxu0 0.0
        %1258 = vmatpush1.msra.mxu0 0.0
        %1259 = vmatprep.subr.mxu0 0.0
        %1260 = vmatpush1.msra.mxu0 0.0
        %1261 = vmatprep.subr.mxu0 0.0
        %1262 = vmatpush1.msra.mxu0 0.0
        %1263 = vmatprep.subr.mxu0 0.0
        %1264 = vmatpush1.msra.mxu0 0.0
        %1265 = vmatprep.subr.mxu0 0.0
        %1266 = vmatpush1.msra.mxu0 0.0
        %1267 = vmatprep.subr.mxu0 0.0
        %1268 = vmatpush1.msra.mxu0 0.0
        %1269 = vmatprep.subr.mxu0 0.0
        %1270 = vmatpush1.msra.mxu0 0.0
        %1271 = vmatprep.subr.mxu0 0.0
        %1272 = vmatpush1.msra.mxu0 0.0
        %1273 = vmatprep.subr.mxu0 0.0
        %1274 = vmatpush1.msra.mxu0 0.0
        %1275 = vmatprep.subr.mxu0 0.0
        %1276 = vmatpush1.msra.mxu0 0.0
        %1277 = vmatprep.subr.mxu0 0.0
        %1278 = vmatpush1.msra.mxu0 0.0
        %1279 = vmatprep.subr.mxu0 0.0
        %1280 = vmatpush1.msra.mxu0 0.0
        %1281 = vmatprep.subr.mxu0 0.0
        %1282 = vmatpush1.msra.mxu0 0.0
        %1283 = vmatprep.subr.mxu0 0.0
        %1284 = vmatpush1.msra.mxu0 0.0
        %1285 = vmatprep.subr.mxu0 0.0
        %1286 = vmatpush1.msra.mxu0 0.0
        %1287 = vmatprep.subr.mxu0 0.0
        %1288 = vmatpush1.msra.mxu0 0.0
        %1289 = vmatprep.mubr.f32.mxu0 0.0
        %1290 = vmatmul.mubr.f32.gmra.mrb[0].mxu0 %v1223
        %v1291 = vpop.f32.mrb[0].mxu0
        %v1292 = vadd.f32 0.0, %v1291
        %v1293 = vpop.f32.mrb[0].mxu0
        %1294 = vdwg.mxu0
        %1296 = vrot.lane.b32.xlu0 %v928, 8
        %v1297 = vpop.permute.xlu0 %1296
        %1300 = vrot.lane.b32.xlu0 %v1114, 16
        %v1301 = vpop.permute.xlu0 %1300
        %1304 = vrot.lane.b32.xlu0 %v1292, 24
        %v1305 = vpop.permute.xlu0 %1304
        %v1307 = vsel %vm588, %v750, %v1297
        %vm1308 = vcmask 130048
        %v1309 = vsel %vm1308, %v1307, %v1301
        %vm1310 = vcmask 195584
        %v1311 = vsel %vm1310, %v1309, %v1305
        %v1312 = vld [vmem:[%s7] sm:$0xff]
        %v1313 = vld [vmem:[%s7 + $0x8] sm:$0xff]
        %v1314 = vld [vmem:[%s7 + $0x10] sm:$0xff]
        %v1315 = vld [vmem:[%s7 + $0x18] sm:$0xff]
        %v1317 = vsel %vm443, %v1311, 0
        %1319 = vmatprep.subr.mxu0 0.0
        %1320 = vmatpush1.msra.mxu0 %v1312
        %1321 = vmatprep.subr.mxu0 0.0
        %1322 = vmatpush1.msra.mxu0 %v1313
        %1323 = vmatprep.subr.mxu0 0.0
        %1324 = vmatpush1.msra.mxu0 %v1314
        %1325 = vmatprep.subr.mxu0 0.0
        %1326 = vmatpush1.msra.mxu0 %v1315
        %1327 = vmatprep.subr.mxu0 0.0
        %1328 = vmatpush1.msra.mxu0 0.0
        %1329 = vmatprep.subr.mxu0 0.0
        %1330 = vmatpush1.msra.mxu0 0.0
        %1331 = vmatprep.subr.mxu0 0.0
        %1332 = vmatpush1.msra.mxu0 0.0
        %1333 = vmatprep.subr.mxu0 0.0
        %1334 = vmatpush1.msra.mxu0 0.0
        %1335 = vmatprep.subr.mxu0 0.0
        %1336 = vmatpush1.msra.mxu0 0.0
        %1337 = vmatprep.subr.mxu0 0.0
        %1338 = vmatpush1.msra.mxu0 0.0
        %1339 = vmatprep.subr.mxu0 0.0
        %1340 = vmatpush1.msra.mxu0 0.0
        %1341 = vmatprep.subr.mxu0 0.0
        %1342 = vmatpush1.msra.mxu0 0.0
        %1343 = vmatprep.subr.mxu0 0.0
        %1344 = vmatpush1.msra.mxu0 0.0
        %1345 = vmatprep.subr.mxu0 0.0
        %1346 = vmatpush1.msra.mxu0 0.0
        %1347 = vmatprep.subr.mxu0 0.0
        %1348 = vmatpush1.msra.mxu0 0.0
        %1349 = vmatprep.subr.mxu0 0.0
        %1350 = vmatpush1.msra.mxu0 0.0
        %1351 = vmatprep.subr.mxu0 0.0
        %1352 = vmatpush1.msra.mxu0 0.0
        %1353 = vmatprep.subr.mxu0 0.0
        %1354 = vmatpush1.msra.mxu0 0.0
        %1355 = vmatprep.subr.mxu0 0.0
        %1356 = vmatpush1.msra.mxu0 0.0
        %1357 = vmatprep.subr.mxu0 0.0
        %1358 = vmatpush1.msra.mxu0 0.0
        %1359 = vmatprep.subr.mxu0 0.0
        %1360 = vmatpush1.msra.mxu0 0.0
        %1361 = vmatprep.subr.mxu0 0.0
        %1362 = vmatpush1.msra.mxu0 0.0
        %1363 = vmatprep.subr.mxu0 0.0
        %1364 = vmatpush1.msra.mxu0 0.0
        %1365 = vmatprep.subr.mxu0 0.0
        %1366 = vmatpush1.msra.mxu0 0.0
        %1367 = vmatprep.subr.mxu0 0.0
        %1368 = vmatpush1.msra.mxu0 0.0
        %1369 = vmatprep.subr.mxu0 0.0
        %1370 = vmatpush1.msra.mxu0 0.0
        %1371 = vmatprep.subr.mxu0 0.0
        %1372 = vmatpush1.msra.mxu0 0.0
        %1373 = vmatprep.subr.mxu0 0.0
        %1374 = vmatpush1.msra.mxu0 0.0
        %1375 = vmatprep.subr.mxu0 0.0
        %1376 = vmatpush1.msra.mxu0 0.0
        %1377 = vmatprep.subr.mxu0 0.0
        %1378 = vmatpush1.msra.mxu0 0.0
        %1379 = vmatprep.subr.mxu0 0.0
        %1380 = vmatpush1.msra.mxu0 0.0
        %1381 = vmatprep.subr.mxu0 0.0
        %1382 = vmatpush1.msra.mxu0 0.0
        %1383 = vmatprep.mubr.f32.mxu0 0.0
        %1384 = vmatmul.mubr.f32.gmra.mrb[0].mxu0 %v1317
        %v1385 = vpop.f32.mrb[0].mxu0
        %v1386 = vadd.f32 0.0, %v1385
        %v1387 = vpop.f32.mrb[0].mxu0
        %1388 = vdwg.mxu0
        %v1389 = vadd.f32 %v437, %v1386
        %v1390 = vld [vmem:[%s5] sm:$0x1]
        %v1391 = vmul.f32 %v1389, %v1389
        %v1392 = vsel %vm443, %v1391, 0.0
        %1393 = vadd.xlane.f32.xlu0 %v1392
        %v1394 = vpop.xlane.xlu0 %1393
        %v1395 = vmul.f32 %v1394, %v447
        %v1396 = vadd.f32 %v1395, 1e-05
        %v1397 = vrsqrt.pop %v1396
        %v1398 = vmul.f32 %v1389, %v1397
        %v1400 = vlaneseq
        %v1401 = vshrl.u32 %v1400, 7
        %v1402 = vsub.s32 0, %v1401
        %v1403 = vrot.slane %v1390, %v1402
        %v1405 = vmul.f32 %v1398, %v1403
        %v1406 = vld [vmem:[%s8] sm:$0xff]
        %v1407 = vld [vmem:[%s8 + $0x8] sm:$0xff]
        %v1408 = vld [vmem:[%s8 + $0x10] sm:$0xff]
        %v1409 = vld [vmem:[%s8 + $0x18] sm:$0xff]
        %v1411 = vsel %vm443, %v1405, 0
        %1413 = vmatprep.subr.mxu0 0.0
        %1414 = vmatpush1.msra.mxu0 %v1406
        %1415 = vmatprep.subr.mxu0 0.0
        %1416 = vmatpush1.msra.mxu0 %v1407
        %1417 = vmatprep.subr.mxu0 0.0
        %1418 = vmatpush1.msra.mxu0 %v1408
        %1419 = vmatprep.subr.mxu0 0.0
        %1420 = vmatpush1.msra.mxu0 %v1409
        %1421 = vmatprep.subr.mxu0 0.0
        %1422 = vmatpush1.msra.mxu0 0.0
        %1423 = vmatprep.subr.mxu0 0.0
        %1424 = vmatpush1.msra.mxu0 0.0
        %1425 = vmatprep.subr.mxu0 0.0
        %1426 = vmatpush1.msra.mxu0 0.0
        %1427 = vmatprep.subr.mxu0 0.0
        %1428 = vmatpush1.msra.mxu0 0.0
        %1429 = vmatprep.subr.mxu0 0.0
        %1430 = vmatpush1.msra.mxu0 0.0
        %1431 = vmatprep.subr.mxu0 0.0
        %1432 = vmatpush1.msra.mxu0 0.0
        %1433 = vmatprep.subr.mxu0 0.0
        %1434 = vmatpush1.msra.mxu0 0.0
        %1435 = vmatprep.subr.mxu0 0.0
        %1436 = vmatpush1.msra.mxu0 0.0
        %1437 = vmatprep.subr.mxu0 0.0
        %1438 = vmatpush1.msra.mxu0 0.0
        %1439 = vmatprep.subr.mxu0 0.0
        %1440 = vmatpush1.msra.mxu0 0.0
        %1441 = vmatprep.subr.mxu0 0.0
        %1442 = vmatpush1.msra.mxu0 0.0
        %1443 = vmatprep.subr.mxu0 0.0
        %1444 = vmatpush1.msra.mxu0 0.0
        %1445 = vmatprep.subr.mxu0 0.0
        %1446 = vmatpush1.msra.mxu0 0.0
        %1447 = vmatprep.subr.mxu0 0.0
        %1448 = vmatpush1.msra.mxu0 0.0
        %1449 = vmatprep.subr.mxu0 0.0
        %1450 = vmatpush1.msra.mxu0 0.0
        %1451 = vmatprep.subr.mxu0 0.0
        %1452 = vmatpush1.msra.mxu0 0.0
        %1453 = vmatprep.subr.mxu0 0.0
        %1454 = vmatpush1.msra.mxu0 0.0
        %1455 = vmatprep.subr.mxu0 0.0
        %1456 = vmatpush1.msra.mxu0 0.0
        %1457 = vmatprep.subr.mxu0 0.0
        %1458 = vmatpush1.msra.mxu0 0.0
        %1459 = vmatprep.subr.mxu0 0.0
        %1460 = vmatpush1.msra.mxu0 0.0
        %1461 = vmatprep.subr.mxu0 0.0
        %1462 = vmatpush1.msra.mxu0 0.0
        %1463 = vmatprep.subr.mxu0 0.0
        %1464 = vmatpush1.msra.mxu0 0.0
        %1465 = vmatprep.subr.mxu0 0.0
        %1466 = vmatpush1.msra.mxu0 0.0
        %1467 = vmatprep.subr.mxu0 0.0
        %1468 = vmatpush1.msra.mxu0 0.0
        %1469 = vmatprep.subr.mxu0 0.0
        %1470 = vmatpush1.msra.mxu0 0.0
        %1471 = vmatprep.subr.mxu0 0.0
        %1472 = vmatpush1.msra.mxu0 0.0
        %1473 = vmatprep.subr.mxu0 0.0
        %1474 = vmatpush1.msra.mxu0 0.0
        %1475 = vmatprep.subr.mxu0 0.0
        %1476 = vmatpush1.msra.mxu0 0.0
        %1477 = vmatprep.mubr.f32.mxu0 0.0
        %1478 = vmatmul.mubr.f32.gmra.mrb[0].mxu0 %v1411
        %v1479 = vpop.f32.mrb[0].mxu0
        %v1480 = vadd.f32 0.0, %v1479
        %v1481 = vpop.f32.mrb[0].mxu0
        %1482 = vdwg.mxu0
        %v1483 = vxor.u32 %v1480, 2147483648
        %v1484 = vmul.f32 %v1483, 1.442695
        %v1485 = vpow.pop %v1484
        %v1486 = vadd.f32 %v1485, 1.0
        %v1487 = vrcp.pop %v1486
        %v1488 = vmul.f32 1.0, %v1487
        %v1489 = vmul.f32 %v1480, %v1488
        %1491 = vrot.lane.b32.xlu0 %v1480, 64
        %v1492 = vpop.permute.xlu0 %1491
        %v1494 = vmul.f32 %v1489, %v1492
        %v1495 = vld [vmem:[%s9] sm:$0xff]
        %v1496 = vld [vmem:[%s9 + $0x8] sm:$0xff]
        %v1497 = vld [vmem:[%s9 + $0x10] sm:$0xff]
        %v1498 = vld [vmem:[%s9 + $0x18] sm:$0xff]
        %v1499 = vld [vmem:[%s9 + $0x20] sm:$0xff]
        %v1500 = vld [vmem:[%s9 + $0x28] sm:$0xff]
        %v1501 = vld [vmem:[%s9 + $0x30] sm:$0xff]
        %v1502 = vld [vmem:[%s9 + $0x38] sm:$0xff]
        %vm1503 = vcmask 523264
        %v1505 = vsel %vm1503, %v1494, 0
        %1507 = vmatprep.subr.mxu0 0.0
        %1508 = vmatpush1.msra.mxu0 %v1495
        %1509 = vmatprep.subr.mxu0 0.0
        %1510 = vmatpush1.msra.mxu0 %v1496
        %1511 = vmatprep.subr.mxu0 0.0
        %1512 = vmatpush1.msra.mxu0 %v1497
        %1513 = vmatprep.subr.mxu0 0.0
        %1514 = vmatpush1.msra.mxu0 %v1498
        %1515 = vmatprep.subr.mxu0 0.0
        %1516 = vmatpush1.msra.mxu0 %v1499
        %1517 = vmatprep.subr.mxu0 0.0
        %1518 = vmatpush1.msra.mxu0 %v1500
        %1519 = vmatprep.subr.mxu0 0.0
        %1520 = vmatpush1.msra.mxu0 %v1501
        %1521 = vmatprep.subr.mxu0 0.0
        %1522 = vmatpush1.msra.mxu0 %v1502
        %1523 = vmatprep.subr.mxu0 0.0
        %1524 = vmatpush1.msra.mxu0 0.0
        %1525 = vmatprep.subr.mxu0 0.0
        %1526 = vmatpush1.msra.mxu0 0.0
        %1527 = vmatprep.subr.mxu0 0.0
        %1528 = vmatpush1.msra.mxu0 0.0
        %1529 = vmatprep.subr.mxu0 0.0
        %1530 = vmatpush1.msra.mxu0 0.0
        %1531 = vmatprep.subr.mxu0 0.0
        %1532 = vmatpush1.msra.mxu0 0.0
        %1533 = vmatprep.subr.mxu0 0.0
        %1534 = vmatpush1.msra.mxu0 0.0
        %1535 = vmatprep.subr.mxu0 0.0
        %1536 = vmatpush1.msra.mxu0 0.0
        %1537 = vmatprep.subr.mxu0 0.0
        %1538 = vmatpush1.msra.mxu0 0.0
        %1539 = vmatprep.subr.mxu0 0.0
        %1540 = vmatpush1.msra.mxu0 0.0
        %1541 = vmatprep.subr.mxu0 0.0
        %1542 = vmatpush1.msra.mxu0 0.0
        %1543 = vmatprep.subr.mxu0 0.0
        %1544 = vmatpush1.msra.mxu0 0.0
        %1545 = vmatprep.subr.mxu0 0.0
        %1546 = vmatpush1.msra.mxu0 0.0
        %1547 = vmatprep.subr.mxu0 0.0
        %1548 = vmatpush1.msra.mxu0 0.0
        %1549 = vmatprep.subr.mxu0 0.0
        %1550 = vmatpush1.msra.mxu0 0.0
        %1551 = vmatprep.subr.mxu0 0.0
        %1552 = vmatpush1.msra.mxu0 0.0
        %1553 = vmatprep.subr.mxu0 0.0
        %1554 = vmatpush1.msra.mxu0 0.0
        %1555 = vmatprep.subr.mxu0 0.0
        %1556 = vmatpush1.msra.mxu0 0.0
        %1557 = vmatprep.subr.mxu0 0.0
        %1558 = vmatpush1.msra.mxu0 0.0
        %1559 = vmatprep.subr.mxu0 0.0
        %1560 = vmatpush1.msra.mxu0 0.0
        %1561 = vmatprep.subr.mxu0 0.0
        %1562 = vmatpush1.msra.mxu0 0.0
        %1563 = vmatprep.subr.mxu0 0.0
        %1564 = vmatpush1.msra.mxu0 0.0
        %1565 = vmatprep.subr.mxu0 0.0
        %1566 = vmatpush1.msra.mxu0 0.0
        %1567 = vmatprep.subr.mxu0 0.0
        %1568 = vmatpush1.msra.mxu0 0.0
        %1569 = vmatprep.subr.mxu0 0.0
        %1570 = vmatpush1.msra.mxu0 0.0
        %1571 = vmatprep.mubr.f32.mxu0 0.0
        %1572 = vmatmul.mubr.f32.gmra.mrb[0].mxu0 %v1505
        %v1573 = vpop.f32.mrb[0].mxu0
        %v1574 = vadd.f32 0.0, %v1573
        %v1575 = vpop.f32.mrb[0].mxu0
        %1576 = vdwg.mxu0
        %v1577 = vadd.f32 %v1389, %v1574
        %1578 = vst.msk [vmem:[%s436] sm:$0xff] %vm443, %v1577
        %s1579 = sand.u32 %s259, 1
        %s1580 = scalar_lea.sflag [#allocation4], %s1579
        %s1581 = sand.u32 %s259, 1
        %s1582 = smul.addr %s1581, 8
        %s1583 = scalar_lea.vmem [#allocation10], %s1582
        // Predicated region
        $region77: #{tpu_custom_call.1} parent=59 // pred_check
          %p1584 = pneg %p269
        $region78: #{tpu_custom_call.1} parent=59 // pred_check_branch
          %1586 = sbr.rel (%p1584) target = $region80
        $region79: #{tpu_custom_call.1} parent=59 // pred_region
          %s1588 = ssub.s32 128, 128
          %1589 = vsyncadd %s1580, %s1588
          %s1590 = smul.addr %s31, 128
          %s1591 = scalar_lea.hbm %s10, %s1590
          %s1593 = sshll.u32 %s1583, 4
          %s1594 = int_to_ptr.vmem [resolvable:$true] %s1593
          %1596 = dma.vmem_to_hbm [thread:$0]  %s1594, 128, %s1591, %s1580
        $region80: #{tpu_custom_call.1} parent=59 // pred_fallthru
          _
      $region60: #{tpu_custom_call.1} parent=5 // pred_fallthru
        _
      %p1597 = scmp.le.s32.totalorder 2, %s26
      // Predicated region
      $region81: #{tpu_custom_call.1} parent=5 // pred_check
        %p1598 = pneg %p1597
      $region82: #{tpu_custom_call.1} parent=5 // pred_check_branch
        %1600 = sbr.rel (%p1598) target = $region84
      $region83: #{tpu_custom_call.1} parent=5 // pred_region
        %s1601 = ssub.s32 %s26, 2
        // Predicated region
        $region85: #{tpu_custom_call.1} parent=83 // pred_check
          %p1602 = pneg %p275
        $region86: #{tpu_custom_call.1} parent=83 // pred_check_branch
          %1604 = sbr.rel (%p1602) target = $region88
        $region87: #{tpu_custom_call.1} parent=83 // pred_region
          %s1605 = sand.u32 %s260, 1
          %s1606 = scalar_lea.sflag [#allocation4], %s1605
          %s1607 = sand.u32 %s260, 1
          %s1608 = smul.addr %s1607, 8
          %s1609 = scalar_lea.vmem [#allocation10], %s1608
          %1610 = dma.done %s1606, 128
        $region88: #{tpu_custom_call.1} parent=83 // pred_fallthru
          _
      $region84: #{tpu_custom_call.1} parent=5 // pred_fallthru
        _
    $region6: #{tpu_custom_call.1} parent=1 // loop_footer
      %s30 = sadd.s32 1, %s26
    $region7: #{tpu_custom_call.1} parent=1 // loop_footer_branch
      %25 = sbr.rel target = $region3
    $region8: #{tpu_custom_call.1} parent=1 // loop_exit
      _
    %1611 = vsyncpa [#allocation3], 1
    %s1612 = scalar_lea.sflag [#allocation3], 1
    %1613 = vsyncpa %s1612, 1
    %1614 = vsyncpa [#allocation6], 1
    %s1615 = scalar_lea.sflag [#allocation6], 1
    %1616 = vsyncpa %s1615, 1
    %1617 = vsyncpa [#allocation9], 1
    %1618 = vsyncpa [#allocation4], 1
    %s1619 = scalar_lea.sflag [#allocation4], 1
    %1620 = vsyncpa %s1619, 1

</llo_original>
